<compile_context>
chip_gen: v6e
topology: v6e:2x2x1
jax: 0.10.0
libtpu: 0.0.40
codegen_flags: <defaults>
</compile_context>

<pallas_src>
import functools

import jax
import jax.numpy as jnp
from jax import lax
from jax.experimental import pallas as pl
from jax.experimental.pallas import tpu as pltpu


def _round_up(x, m):
    return (x + m - 1) // m * m


def _conv_bn_relu_kernel(x_ref, w_ref, b_ref, o_ref, *, kh, kw, w_img, m_rows):
    # x_ref: (1, P_ROWS, CIN)   f32   flattened image (spatial on sublanes, Cin on lanes)
    # w_ref: (KH*KW, CIN, COUT) bf16  conv weights with BN scale pre-folded in
    # b_ref: (1, COUT)          f32   folded conv-bias + BN shift
    # o_ref: (1, M_ROWS, COUT)  bf16  exact-size output slab (flat spatial x Cout)
    cout = o_ref.shape[2]
    acc = jnp.zeros((m_rows, cout), jnp.float32)
    for di in range(kh):
        for dj in range(kw):
            off = di * w_img + dj
            # Shifted flat-spatial window: row m of this slice holds
            # x[.., oh+di, ow+dj, :] for m = oh*W + ow.  Wrapped rows only affect
            # output columns ow >= Wo, which the wrapper crops.
            xt = x_ref[0, off:off + m_rows, :].astype(jnp.bfloat16)     # (M_ROWS, CIN)
            acc = acc + jnp.dot(xt, w_ref[di * kw + dj],
                                preferred_element_type=jnp.float32)
    y = acc + b_ref[...]                       # folded BatchNorm (scale already in w)
    o_ref[0] = jnp.maximum(y, 0.0).astype(o_ref.dtype)   # ReLU, bf16 writeback


def prepare_conv_layer_params(weight, conv_bias, gamma, beta, run_mean, run_var,
                              eps=1e-5):
    """One-time (init-time) prep: BN folding into the weights, tap layout, bf16 cast."""
    cout, cin, kh, kw = weight.shape
    # Fold BN (eval mode) scale into the conv weights in f32, THEN cast to bf16.
    scale = gamma / jnp.sqrt(run_var + eps)                       # (Cout,) f32
    w_scaled = weight * scale[:, None, None, None]                # f32 math
    # OIHW -> (KH*KW, Cin, Cout): one (Cin, Cout) GEMM operand per tap.
    w_taps = jnp.transpose(w_scaled, (2, 3, 1, 0)).reshape(kh * kw, cin, cout)
    w_taps = w_taps.astype(jnp.bfloat16)
    # Folded conv-bias + BN shift, kept in f32 for the epilogue.
    bias_row = (beta + (conv_bias - run_mean) * scale).astype(jnp.float32)[None, :]
    return w_taps, bias_row


@functools.partial(jax.jit, static_argnames=("kh", "kw", "cout"))
def conv_layer_pallas(x_nchw, w_taps, bias_row, *, kh, kw, cout):
    """Forward of ConvLayer: Conv2d(valid, stride 1) -> BN(eval) -> ReLU.

    x_nchw: (N, Cin, H, W) float32 (PyTorch layout); returns (N, Cout, Ho, Wo) f32.
    """
    n, cin, h, w = x_nchw.shape
    ho, wo = h - kh + 1, w - kw + 1

    m_rows = _round_up(ho * w, 8)                 # GEMM M / rows written per image
    max_off = (kh - 1) * w + (kw - 1)             # largest tap shift
    p_rows = _round_up(max_off + m_rows, 8)       # padded flat spatial extent (>= H*W)

    # Single copy of the input in HBM (NCHW -> flattened NHWC), kept f32 so the
    # shifted sublane windows sit on 32-bit rows; taps are cast to bf16 in-kernel.
    x_flat = jnp.transpose(x_nchw, (0, 2, 3, 1)).reshape(n, h * w, cin)
    x_flat = jnp.pad(x_flat, ((0, 0), (0, p_rows - h * w), (0, 0)))

    cost = pl.CostEstimate(                       # real (unpadded) work, per review
        flops=2 * n * ho * wo * cout * cin * kh * kw,
        transcendentals=0,
        bytes_accessed=(x_flat.size * 4 + w_taps.size * 2 + bias_row.size * 4
                        + n * m_rows * cout * 2))

    kern = functools.partial(_conv_bn_relu_kernel,
                             kh=kh, kw=kw, w_img=w, m_rows=m_rows)

    out = pl.pallas_call(
        kern,
        out_shape=jax.ShapeDtypeStruct((n, m_rows, cout), jnp.bfloat16),
        grid_spec=pltpu.PrefetchScalarGridSpec(
            num_scalar_prefetch=0,
            # One image per grid step; "parallel" lets v7x shard the batch across
            # its two TensorCores.  No M-splitting on single-TC chips (v5e/v6e).
            grid=(n,),
            in_specs=[
                pl.BlockSpec((1, p_rows, cin), lambda i: (i, 0, 0)),
                # Grid-invariant weight / bias blocks (for large real layers these
                # would also be single-buffered via pipeline_mode=pl.Buffered(1)).
                pl.BlockSpec(w_taps.shape, lambda i: (0, 0, 0)),
                pl.BlockSpec(bias_row.shape, lambda i: (0, 0)),
            ],
            out_specs=pl.BlockSpec((1, m_rows, cout), lambda i: (i, 0, 0)),
        ),
        compiler_params=pltpu.CompilerParams(
            dimension_semantics=("parallel",)),
        cost_estimate=cost,
    )(x_flat, w_taps, bias_row)

    # Exact-size bf16 slab -> crop wrapped columns, restore NCHW, widen to f32.
    # Single small fused XLA epilogue (reads ~N*Ho*W*Cout bf16, not a padded slab).
    out = out[:, :ho * w, :].reshape(n, ho, w, cout)[:, :, :wo, :]
    return jnp.transpose(out, (0, 3, 1, 2)).astype(jnp.float32)


def _reference(x_nchw, weight, conv_bias, gamma, beta, run_mean, run_var, eps=1e-5):
    y = lax.conv_general_dilated(
        x_nchw, weight, window_strides=(1, 1), padding="VALID",
        dimension_numbers=("NCHW", "OIHW", "NCHW"))
    y = y + conv_bias[None, :, None, None]
    s = gamma / jnp.sqrt(run_var + eps)
    y = (y - run_mean[None, :, None, None]) * s[None, :, None, None] \
        + beta[None, :, None, None]
    return jnp.maximum(y, 0.0)


if __name__ == "__main__":
    key = jax.random.PRNGKey(0)
    k1, k2, k3, k4, k5, k6, k7 = jax.random.split(key, 7)

    # ConvLayer(in_channels=4, out_channels=8, kernel_size=3)
    N, CIN, H, W = 2, 4, 16, 16
    COUT, KH, KW = 8, 3, 3

    x = jax.random.normal(k1, (N, CIN, H, W), dtype=jnp.float32)
    weight = jax.random.normal(k2, (COUT, CIN, KH, KW), dtype=jnp.float32) * 0.1
    conv_bias = jax.random.normal(k3, (COUT,), dtype=jnp.float32) * 0.1
    gamma = 1.0 + 0.1 * jax.random.normal(k4, (COUT,), dtype=jnp.float32)
    beta = 0.1 * jax.random.normal(k5, (COUT,), dtype=jnp.float32)
    run_mean = 0.1 * jax.random.normal(k6, (COUT,), dtype=jnp.float32)
    run_var = jnp.abs(jax.random.normal(k7, (COUT,), dtype=jnp.float32)) + 0.5

    # One-time parameter prep (would live in module init in a real model).
    w_taps, bias_row = prepare_conv_layer_params(
        weight, conv_bias, gamma, beta, run_mean, run_var)

    out = conv_layer_pallas(x, w_taps, bias_row, kh=KH, kw=KW, cout=COUT)
    out = jax.block_until_ready(out)

    ref = _reference(x, weight, conv_bias, gamma, beta, run_mean, run_var)
    assert out.shape == (N, COUT, H - KH + 1, W - KW + 1)
    max_err = float(jnp.max(jnp.abs(out - ref)))
    # bf16 weights/activations on the MXU + bf16 output store -> loosened tolerance.
    assert jnp.allclose(out, ref, atol=5e-2, rtol=5e-2), \
        f"mismatch vs reference (max abs err={max_err})"

    print("KERNEL_OK")
</pallas_src>

<mosaic_0001>
module attributes {stable_mosaic.version = 11 : i64} {
  func.func @_conv_bn_relu_kernel(%arg0: i32, %arg1: memref<1x264x4xf32, #tpu.memory_space<vmem>>, %arg2: memref<9x4x8xbf16, #tpu.memory_space<vmem>>, %arg3: memref<1x8xf32, #tpu.memory_space<vmem>>, %arg4: memref<1x224x8xbf16, #tpu.memory_space<vmem>>) attributes {dimension_semantics = [#tpu.dimension_semantics<parallel>], iteration_bounds = array<i64: 2>, scalar_prefetch = 0 : i64, scratch_operands = 0 : i64, tpu.core_type = #tpu.core_type<tc>, window_params = [{transform_indices = @transform_0, window_bounds = array<i64: 1, 264, 4>}, {pipeline_mode = #tpu.pipeline_mode<synchronous>, transform_indices = @transform_1, window_bounds = array<i64: 9, 4, 8>}, {pipeline_mode = #tpu.pipeline_mode<synchronous>, transform_indices = @transform_2, window_bounds = array<i64: 1, 8>}, {transform_indices = @transform_3, window_bounds = array<i64: 1, 224, 8>}]} {
    %cst = arith.constant 0.000000e+00 : f32
    %0 = vector.broadcast %cst : f32 to vector<224x8xf32>
    %c0 = arith.constant 0 : index
    %c0_0 = arith.constant 0 : index
    %c0_1 = arith.constant 0 : index
    %1 = vector.load %arg1[%c0, %c0_0, %c0_1] : memref<1x264x4xf32, #tpu.memory_space<vmem>>, vector<1x224x4xf32>
    %2 = vector.shape_cast %1 : vector<1x224x4xf32> to vector<224x4xf32>
    %3 = arith.truncf %2 : vector<224x4xf32> to vector<224x4xbf16>
    %c0_2 = arith.constant 0 : index
    %c0_3 = arith.constant 0 : index
    %c0_4 = arith.constant 0 : index
    %4 = vector.load %arg2[%c0_2, %c0_3, %c0_4] : memref<9x4x8xbf16, #tpu.memory_space<vmem>>, vector<1x4x8xbf16>
    %5 = vector.shape_cast %4 : vector<1x4x8xbf16> to vector<4x8xbf16>
    %cst_5 = arith.constant dense<0.000000e+00> : vector<224x8xf32>
    %6 = tpu.matmul %3, %5, %cst_5 {dimension_numbers = #tpu.dot_dimension_numbers<[1], [0], [0], [1], [0, 0, 1, 1], [], []>} : vector<224x4xbf16>, vector<4x8xbf16>, vector<224x8xf32> -> vector<224x8xf32>
    %7 = arith.addf %0, %6 : vector<224x8xf32>
    %c0_6 = arith.constant 0 : index
    %c1 = arith.constant 1 : index
    %c0_7 = arith.constant 0 : index
    %8 = vector.load %arg1[%c0_6, %c1, %c0_7] : memref<1x264x4xf32, #tpu.memory_space<vmem>>, vector<1x224x4xf32>
    %9 = vector.shape_cast %8 : vector<1x224x4xf32> to vector<224x4xf32>
    %10 = arith.truncf %9 : vector<224x4xf32> to vector<224x4xbf16>
    %c1_8 = arith.constant 1 : index
    %c0_9 = arith.constant 0 : index
    %c0_10 = arith.constant 0 : index
    %11 = vector.load %arg2[%c1_8, %c0_9, %c0_10] : memref<9x4x8xbf16, #tpu.memory_space<vmem>>, vector<1x4x8xbf16>
    %12 = vector.shape_cast %11 : vector<1x4x8xbf16> to vector<4x8xbf16>
    %cst_11 = arith.constant dense<0.000000e+00> : vector<224x8xf32>
    %13 = tpu.matmul %10, %12, %cst_11 {dimension_numbers = #tpu.dot_dimension_numbers<[1], [0], [0], [1], [0, 0, 1, 1], [], []>} : vector<224x4xbf16>, vector<4x8xbf16>, vector<224x8xf32> -> vector<224x8xf32>
    %14 = arith.addf %7, %13 : vector<224x8xf32>
    %c0_12 = arith.constant 0 : index
    %c2 = arith.constant 2 : index
    %c0_13 = arith.constant 0 : index
    %15 = vector.load %arg1[%c0_12, %c2, %c0_13] : memref<1x264x4xf32, #tpu.memory_space<vmem>>, vector<1x224x4xf32>
    %16 = vector.shape_cast %15 : vector<1x224x4xf32> to vector<224x4xf32>
    %17 = arith.truncf %16 : vector<224x4xf32> to vector<224x4xbf16>
    %c2_14 = arith.constant 2 : index
    %c0_15 = arith.constant 0 : index
    %c0_16 = arith.constant 0 : index
    %18 = vector.load %arg2[%c2_14, %c0_15, %c0_16] : memref<9x4x8xbf16, #tpu.memory_space<vmem>>, vector<1x4x8xbf16>
    %19 = vector.shape_cast %18 : vector<1x4x8xbf16> to vector<4x8xbf16>
    %cst_17 = arith.constant dense<0.000000e+00> : vector<224x8xf32>
    %20 = tpu.matmul %17, %19, %cst_17 {dimension_numbers = #tpu.dot_dimension_numbers<[1], [0], [0], [1], [0, 0, 1, 1], [], []>} : vector<224x4xbf16>, vector<4x8xbf16>, vector<224x8xf32> -> vector<224x8xf32>
    %21 = arith.addf %14, %20 : vector<224x8xf32>
    %c0_18 = arith.constant 0 : index
    %c16 = arith.constant 16 : index
    %c0_19 = arith.constant 0 : index
    %22 = vector.load %arg1[%c0_18, %c16, %c0_19] : memref<1x264x4xf32, #tpu.memory_space<vmem>>, vector<1x224x4xf32>
    %23 = vector.shape_cast %22 : vector<1x224x4xf32> to vector<224x4xf32>
    %24 = arith.truncf %23 : vector<224x4xf32> to vector<224x4xbf16>
    %c3 = arith.constant 3 : index
    %c0_20 = arith.constant 0 : index
    %c0_21 = arith.constant 0 : index
    %25 = vector.load %arg2[%c3, %c0_20, %c0_21] : memref<9x4x8xbf16, #tpu.memory_space<vmem>>, vector<1x4x8xbf16>
    %26 = vector.shape_cast %25 : vector<1x4x8xbf16> to vector<4x8xbf16>
    %cst_22 = arith.constant dense<0.000000e+00> : vector<224x8xf32>
    %27 = tpu.matmul %24, %26, %cst_22 {dimension_numbers = #tpu.dot_dimension_numbers<[1], [0], [0], [1], [0, 0, 1, 1], [], []>} : vector<224x4xbf16>, vector<4x8xbf16>, vector<224x8xf32> -> vector<224x8xf32>
    %28 = arith.addf %21, %27 : vector<224x8xf32>
    %c0_23 = arith.constant 0 : index
    %c17 = arith.constant 17 : index
    %c0_24 = arith.constant 0 : index
    %29 = vector.load %arg1[%c0_23, %c17, %c0_24] : memref<1x264x4xf32, #tpu.memory_space<vmem>>, vector<1x224x4xf32>
    %30 = vector.shape_cast %29 : vector<1x224x4xf32> to vector<224x4xf32>
    %31 = arith.truncf %30 : vector<224x4xf32> to vector<224x4xbf16>
    %c4 = arith.constant 4 : index
    %c0_25 = arith.constant 0 : index
    %c0_26 = arith.constant 0 : index
    %32 = vector.load %arg2[%c4, %c0_25, %c0_26] : memref<9x4x8xbf16, #tpu.memory_space<vmem>>, vector<1x4x8xbf16>
    %33 = vector.shape_cast %32 : vector<1x4x8xbf16> to vector<4x8xbf16>
    %cst_27 = arith.constant dense<0.000000e+00> : vector<224x8xf32>
    %34 = tpu.matmul %31, %33, %cst_27 {dimension_numbers = #tpu.dot_dimension_numbers<[1], [0], [0], [1], [0, 0, 1, 1], [], []>} : vector<224x4xbf16>, vector<4x8xbf16>, vector<224x8xf32> -> vector<224x8xf32>
    %35 = arith.addf %28, %34 : vector<224x8xf32>
    %c0_28 = arith.constant 0 : index
    %c18 = arith.constant 18 : index
    %c0_29 = arith.constant 0 : index
    %36 = vector.load %arg1[%c0_28, %c18, %c0_29] : memref<1x264x4xf32, #tpu.memory_space<vmem>>, vector<1x224x4xf32>
    %37 = vector.shape_cast %36 : vector<1x224x4xf32> to vector<224x4xf32>
    %38 = arith.truncf %37 : vector<224x4xf32> to vector<224x4xbf16>
    %c5 = arith.constant 5 : index
    %c0_30 = arith.constant 0 : index
    %c0_31 = arith.constant 0 : index
    %39 = vector.load %arg2[%c5, %c0_30, %c0_31] : memref<9x4x8xbf16, #tpu.memory_space<vmem>>, vector<1x4x8xbf16>
    %40 = vector.shape_cast %39 : vector<1x4x8xbf16> to vector<4x8xbf16>
    %cst_32 = arith.constant dense<0.000000e+00> : vector<224x8xf32>
    %41 = tpu.matmul %38, %40, %cst_32 {dimension_numbers = #tpu.dot_dimension_numbers<[1], [0], [0], [1], [0, 0, 1, 1], [], []>} : vector<224x4xbf16>, vector<4x8xbf16>, vector<224x8xf32> -> vector<224x8xf32>
    %42 = arith.addf %35, %41 : vector<224x8xf32>
    %c0_33 = arith.constant 0 : index
    %c32 = arith.constant 32 : index
    %c0_34 = arith.constant 0 : index
    %43 = vector.load %arg1[%c0_33, %c32, %c0_34] : memref<1x264x4xf32, #tpu.memory_space<vmem>>, vector<1x224x4xf32>
    %44 = vector.shape_cast %43 : vector<1x224x4xf32> to vector<224x4xf32>
    %45 = arith.truncf %44 : vector<224x4xf32> to vector<224x4xbf16>
    %c6 = arith.constant 6 : index
    %c0_35 = arith.constant 0 : index
    %c0_36 = arith.constant 0 : index
    %46 = vector.load %arg2[%c6, %c0_35, %c0_36] : memref<9x4x8xbf16, #tpu.memory_space<vmem>>, vector<1x4x8xbf16>
    %47 = vector.shape_cast %46 : vector<1x4x8xbf16> to vector<4x8xbf16>
    %cst_37 = arith.constant dense<0.000000e+00> : vector<224x8xf32>
    %48 = tpu.matmul %45, %47, %cst_37 {dimension_numbers = #tpu.dot_dimension_numbers<[1], [0], [0], [1], [0, 0, 1, 1], [], []>} : vector<224x4xbf16>, vector<4x8xbf16>, vector<224x8xf32> -> vector<224x8xf32>
    %49 = arith.addf %42, %48 : vector<224x8xf32>
    %c0_38 = arith.constant 0 : index
    %c33 = arith.constant 33 : index
    %c0_39 = arith.constant 0 : index
    %50 = vector.load %arg1[%c0_38, %c33, %c0_39] : memref<1x264x4xf32, #tpu.memory_space<vmem>>, vector<1x224x4xf32>
    %51 = vector.shape_cast %50 : vector<1x224x4xf32> to vector<224x4xf32>
    %52 = arith.truncf %51 : vector<224x4xf32> to vector<224x4xbf16>
    %c7 = arith.constant 7 : index
    %c0_40 = arith.constant 0 : index
    %c0_41 = arith.constant 0 : index
    %53 = vector.load %arg2[%c7, %c0_40, %c0_41] : memref<9x4x8xbf16, #tpu.memory_space<vmem>>, vector<1x4x8xbf16>
    %54 = vector.shape_cast %53 : vector<1x4x8xbf16> to vector<4x8xbf16>
    %cst_42 = arith.constant dense<0.000000e+00> : vector<224x8xf32>
    %55 = tpu.matmul %52, %54, %cst_42 {dimension_numbers = #tpu.dot_dimension_numbers<[1], [0], [0], [1], [0, 0, 1, 1], [], []>} : vector<224x4xbf16>, vector<4x8xbf16>, vector<224x8xf32> -> vector<224x8xf32>
    %56 = arith.addf %49, %55 : vector<224x8xf32>
    %c0_43 = arith.constant 0 : index
    %c34 = arith.constant 34 : index
    %c0_44 = arith.constant 0 : index
    %57 = vector.load %arg1[%c0_43, %c34, %c0_44] : memref<1x264x4xf32, #tpu.memory_space<vmem>>, vector<1x224x4xf32>
    %58 = vector.shape_cast %57 : vector<1x224x4xf32> to vector<224x4xf32>
    %59 = arith.truncf %58 : vector<224x4xf32> to vector<224x4xbf16>
    %c8 = arith.constant 8 : index
    %c0_45 = arith.constant 0 : index
    %c0_46 = arith.constant 0 : index
    %60 = vector.load %arg2[%c8, %c0_45, %c0_46] : memref<9x4x8xbf16, #tpu.memory_space<vmem>>, vector<1x4x8xbf16>
    %61 = vector.shape_cast %60 : vector<1x4x8xbf16> to vector<4x8xbf16>
    %cst_47 = arith.constant dense<0.000000e+00> : vector<224x8xf32>
    %62 = tpu.matmul %59, %61, %cst_47 {dimension_numbers = #tpu.dot_dimension_numbers<[1], [0], [0], [1], [0, 0, 1, 1], [], []>} : vector<224x4xbf16>, vector<4x8xbf16>, vector<224x8xf32> -> vector<224x8xf32>
    %63 = arith.addf %56, %62 : vector<224x8xf32>
    %c0_48 = arith.constant 0 : index
    %c0_49 = arith.constant 0 : index
    %64 = vector.load %arg3[%c0_48, %c0_49] : memref<1x8xf32, #tpu.memory_space<vmem>>, vector<1x8xf32>
    %65 = vector.broadcast %64 : vector<1x8xf32> to vector<224x8xf32>
    %66 = arith.addf %63, %65 : vector<224x8xf32>
    %cst_50 = arith.constant 0.000000e+00 : f32
    %67 = vector.broadcast %cst_50 : f32 to vector<224x8xf32>
    %68 = arith.maximumf %66, %67 : vector<224x8xf32>
    %69 = arith.truncf %68 : vector<224x8xf32> to vector<224x8xbf16>
    %c0_51 = arith.constant 0 : index
    %c0_52 = arith.constant 0 : index
    %c0_53 = arith.constant 0 : index
    %70 = vector.load %arg4[%c0_51, %c0_52, %c0_53] : memref<1x224x8xbf16, #tpu.memory_space<vmem>>, vector<1x224x8xbf16>
    %71 = vector.shape_cast %70 : vector<1x224x8xbf16> to vector<224x8xbf16>
    %72 = vector.shape_cast %69 : vector<224x8xbf16> to vector<1x224x8xbf16>
    tpu.vector_store %arg4[%c0_51, %c0_52, %c0_53], %72 {strides = array<i32>} : memref<1x224x8xbf16, #tpu.memory_space<vmem>>, vector<1x224x8xbf16>,
    return
  }
  func.func @transform_0(%arg0: i32) -> (i32, i32, i32) {
    %c0_i32 = arith.constant 0 : i32
    %c0_i32_0 = arith.constant 0 : i32
    %c0_i32_1 = arith.constant 0 : i32
    return %arg0, %c0_i32, %c0_i32_0 : i32, i32, i32
  }
  func.func @transform_1(%arg0: i32) -> (i32, i32, i32) {
    %c0_i32 = arith.constant 0 : i32
    %c0_i32_0 = arith.constant 0 : i32
    %c0_i32_1 = arith.constant 0 : i32
    %c0_i32_2 = arith.constant 0 : i32
    return %c0_i32, %c0_i32_0, %c0_i32_1 : i32, i32, i32
  }
  func.func @transform_2(%arg0: i32) -> (i32, i32) {
    %c0_i32 = arith.constant 0 : i32
    %c0_i32_0 = arith.constant 0 : i32
    %c0_i32_1 = arith.constant 0 : i32
    return %c0_i32, %c0_i32_0 : i32, i32
  }
  func.func @transform_3(%arg0: i32) -> (i32, i32, i32) {
    %c0_i32 = arith.constant 0 : i32
    %c0_i32_0 = arith.constant 0 : i32
    %c0_i32_1 = arith.constant 0 : i32
    return %arg0, %c0_i32, %c0_i32_0 : i32, i32, i32
  }
}

</mosaic_0001>

<llo_original>
// kernel: conv_layer_pallas.1
$region0: #{conv_layer_pallas.1}
  #allocation0 [shape = 'u32[]', space=smem, size = 0x4, offset = 0x4, fixed_abs, tag = 'smem constant byte address 0x4 - core index']
  #allocation1 [shape = 'u32[144,128]{1,0:T(1,128)}', space=vmem, size = 0x12000, scoped, tag = 'internal scratch']
  %s0 = inlined_call_operand.vmem [shape: f32[2,264,4], index: 0, kind: input, shape index: {}]
  %s1 = inlined_call_operand.vmem [shape: bf16[9,4,8], index: 1, kind: input, shape index: {}]
  %s2 = inlined_call_operand.vmem [shape: f32[1,8], index: 2, kind: input, shape index: {}]
  %s3 = inlined_call_operand.vmem [shape: bf16[2,224,8], index: 3, kind: output, shape index: {}]
  %s4 = sld [smem:[#allocation0]]
  $region45: #{conv_layer_pallas.1} parent=0
    _
  %s6 = ssub.s32 1, %s4
  %s7 = scalar_select 0, %s6, %s4
  loop: start=0, step=1, limit=4
  $region2: #{conv_layer_pallas.1} parent=0 // loop_pre_header
    _
  $region3: #{conv_layer_pallas.1} parent=0 // loop_header
    %s9 = sphi 0, %s13
    %p10 = scmp.ge.s32.totalorder %s9, 4
    %s19 = sphi 0, %s21
    %s22 = sphi 0, %s19
    %s23 = sphi 0, %s22
    %s39 = sphi 0, %s23
    %s43 = sphi 0, %s43
    %s45 = sphi 0, %s43
    %s46 = sphi 0, %s45
    %s60 = sphi 0, %s46
    %s64 = sphi 0, %s64
    %s66 = sphi 0, %s64
    %s67 = sphi 0, %s66
    %s81 = sphi 0, %s67
    %s87 = sphi 0, %s89
    %s90 = sphi 0, %s87
    %s91 = sphi 0, %s90
    %s107 = sphi 0, %s91
  $region4: #{conv_layer_pallas.1} parent=0 // loop_header_branch
    %12 = sbr.rel (%p10) target = $region8
  $region5: #{conv_layer_pallas.1} parent=0 // loop_body
    %s14 = ssub.s32 %s9, 1
    %s15 = ssub.s32 %s9, 2
    %s16 = sadd.s32 %s9, 1
    %s17 = ssub.s32 %s9, %s16
    %p18 = scmp.eq.s32.totalorder %s17, 0
    %s20 = sadd.s32 %s19, 1
    %s21 = scalar_select %p18, %s19, %s20
    %p24 = pneg %p18
    %p25 = scmp.eq.s32.totalorder %s9, 1
    %p26 = por %p24, %p25
    %p27 = scmp.ne.s32.totalorder %s19, %s22
    %p28 = scmp.eq.s32.totalorder %s9, 0
    %p29 = por %p27, %p28
    %p30 = scmp.ne.s32.totalorder %s19, %s22
    %p31 = scmp.eq.s32.totalorder %s14, 1
    %p32 = por %p30, %p31
    %p33 = scmp.ne.s32.totalorder %s22, %s23
    %p34 = scmp.eq.s32.totalorder %s14, 0
    %p35 = por %p33, %p34
    %p36 = scmp.ne.s32.totalorder %s22, %s23
    %p37 = scmp.eq.s32.totalorder %s15, 1
    %p38 = por %p36, %p37
    %p40 = scmp.ne.s32.totalorder %s23, %s39
    %p41 = scmp.eq.s32.totalorder %s15, 0
    %p42 = por %p40, %p41
    %s44 = sadd.s32 %s43, 1
    %p47 = scmp.eq.s32.totalorder %s9, 1
    %p48 = scmp.ne.s32.totalorder %s43, %s45
    %p49 = scmp.eq.s32.totalorder %s9, 0
    %p50 = por %p48, %p49
    %p51 = scmp.ne.s32.totalorder %s43, %s45
    %p52 = scmp.eq.s32.totalorder %s14, 1
    %p53 = por %p51, %p52
    %p54 = scmp.ne.s32.totalorder %s45, %s46
    %p55 = scmp.eq.s32.totalorder %s14, 0
    %p56 = por %p54, %p55
    %p57 = scmp.ne.s32.totalorder %s45, %s46
    %p58 = scmp.eq.s32.totalorder %s15, 1
    %p59 = por %p57, %p58
    %p61 = scmp.ne.s32.totalorder %s46, %s60
    %p62 = scmp.eq.s32.totalorder %s15, 0
    %p63 = por %p61, %p62
    %s65 = sadd.s32 %s64, 1
    %p68 = scmp.eq.s32.totalorder %s9, 1
    %p69 = scmp.ne.s32.totalorder %s64, %s66
    %p70 = scmp.eq.s32.totalorder %s9, 0
    %p71 = por %p69, %p70
    %p72 = scmp.ne.s32.totalorder %s64, %s66
    %p73 = scmp.eq.s32.totalorder %s14, 1
    %p74 = por %p72, %p73
    %p75 = scmp.ne.s32.totalorder %s66, %s67
    %p76 = scmp.eq.s32.totalorder %s14, 0
    %p77 = por %p75, %p76
    %p78 = scmp.ne.s32.totalorder %s66, %s67
    %p79 = scmp.eq.s32.totalorder %s15, 1
    %p80 = por %p78, %p79
    %p82 = scmp.ne.s32.totalorder %s67, %s81
    %p83 = scmp.eq.s32.totalorder %s15, 0
    %p84 = por %p82, %p83
    %s85 = ssub.s32 %s9, %s16
    %p86 = scmp.eq.s32.totalorder %s85, 0
    %s88 = sadd.s32 %s87, 1
    %s89 = scalar_select %p86, %s87, %s88
    %p92 = pneg %p86
    %p93 = scmp.eq.s32.totalorder %s9, 1
    %p94 = por %p92, %p93
    %p95 = scmp.ne.s32.totalorder %s87, %s90
    %p96 = scmp.eq.s32.totalorder %s9, 0
    %p97 = por %p95, %p96
    %p98 = scmp.ne.s32.totalorder %s87, %s90
    %p99 = scmp.eq.s32.totalorder %s14, 1
    %p100 = por %p98, %p99
    %p101 = scmp.ne.s32.totalorder %s90, %s91
    %p102 = scmp.eq.s32.totalorder %s14, 0
    %p103 = por %p101, %p102
    %p104 = scmp.ne.s32.totalorder %s90, %s91
    %p105 = scmp.eq.s32.totalorder %s15, 1
    %p106 = por %p104, %p105
    %p108 = scmp.ne.s32.totalorder %s91, %s107
    %p109 = scmp.eq.s32.totalorder %s15, 0
    %p110 = por %p108, %p109
    %p111 = scmp.le.s32.totalorder 1, %s9
    %p112 = scmp.lt.s32.totalorder %s9, 3
    %p113 = pnand %p111, %p112
    %p114 = pneg %p113
    // Predicated region
    $region9: #{conv_layer_pallas.1} parent=5 // pred_check
      _
    $region10: #{conv_layer_pallas.1} parent=5 // pred_check_branch
      %116 = sbr.rel (%p113) target = $region12
    $region11: #{conv_layer_pallas.1} parent=5 // pred_region
      %s117 = ssub.s32 %s9, 1
      // Predicated region
      $region13: #{conv_layer_pallas.1} parent=11 // pred_check
        %p118 = pneg %p56
      $region14: #{conv_layer_pallas.1} parent=11 // pred_check_branch
        %120 = sbr.rel (%p118) target = $region16
      $region15: #{conv_layer_pallas.1} parent=11 // pred_region
        _
      $region16: #{conv_layer_pallas.1} parent=11 // pred_fallthru
        _
      // Predicated region
      $region17: #{conv_layer_pallas.1} parent=11 // pred_check
        %p121 = pneg %p77
      $region18: #{conv_layer_pallas.1} parent=11 // pred_check_branch
        %123 = sbr.rel (%p121) target = $region20
      $region19: #{conv_layer_pallas.1} parent=11 // pred_region
        _
      $region20: #{conv_layer_pallas.1} parent=11 // pred_fallthru
        _
    $region12: #{conv_layer_pallas.1} parent=5 // pred_fallthru
      _
    %p124 = scmp.lt.s32.totalorder %s9, 2
    // Predicated region
    $region21: #{conv_layer_pallas.1} parent=5 // pred_check
      %p125 = pneg %p124
    $region22: #{conv_layer_pallas.1} parent=5 // pred_check_branch
      %127 = sbr.rel (%p125) target = $region24
    $region23: #{conv_layer_pallas.1} parent=5 // pred_region
      // Predicated region
      $region25: #{conv_layer_pallas.1} parent=23 // pred_check
        %p128 = pneg %p29
      $region26: #{conv_layer_pallas.1} parent=23 // pred_check_branch
        %130 = sbr.rel (%p128) target = $region28
      $region27: #{conv_layer_pallas.1} parent=23 // pred_region
        %p131 = scmp.lt.s32.totalorder %s9, 1
        %s132 = scalar_select %p131, %s9, 1
        %s133 = smul.addr %s132, 33
        %s134 = smul.addr %s133, 8
        %s135 = scalar_lea.vmem %s0, %s134
      $region28: #{conv_layer_pallas.1} parent=23 // pred_fallthru
        _
    $region24: #{conv_layer_pallas.1} parent=5 // pred_fallthru
      _
    %p136 = scmp.le.s32.totalorder 1, %s9
    %p137 = scmp.lt.s32.totalorder %s9, 3
    %p138 = pnand %p136, %p137
    %p139 = pneg %p138
    // Predicated region
    $region29: #{conv_layer_pallas.1} parent=5 // pred_check
      _
    $region30: #{conv_layer_pallas.1} parent=5 // pred_check_branch
      %141 = sbr.rel (%p138) target = $region32
    $region31: #{conv_layer_pallas.1} parent=5 // pred_region
      %s142 = ssub.s32 %s9, 1
      %p143 = scmp.lt.s32.totalorder %s14, 1
      %s144 = scalar_select %p143, %s14, 1
      %s145 = smul.addr %s144, 33
      %s146 = smul.addr %s145, 8
      %s147 = scalar_lea.vmem %s0, %s146
      %p148 = pneg %p35
      %p149 = pneg %p32
      %p150 = pneg %p56
      %p151 = pneg %p53
      %p152 = pneg %p77
      %p153 = pneg %p74
      %p154 = pneg %p103
      %p155 = pneg %p100
      %p156 = scmp.lt.s32.totalorder %s14, 1
      %s157 = scalar_select %p156, %s14, 1
      %s158 = smul.addr %s157, 28
      %s159 = smul.addr %s158, 4
      %s160 = scalar_lea.vmem %s3, %s159
      %p161 = scmp.lt.s32.totalorder %s14, 1
      %s162 = scalar_select %p161, %s14, 1
      %s163 = smul.addr %s162, 33
      %s164 = smul.addr %s163, 8
      %s165 = scalar_lea.vmem %s0, %s164
      %p166 = scmp.lt.s32.totalorder %s14, 1
      %s167 = scalar_select %p166, %s14, 1
      %s168 = smul.addr %s167, 28
      %s169 = smul.addr %s168, 4
      %s170 = scalar_lea.vmem %s3, %s169
      %v172 = vld [vmem:[%s165] sm:$0xff]
      %v173 = vld [vmem:[%s165 + $0x8] sm:$0xff]
      %v174 = vld [vmem:[%s165 + $0x10] sm:$0xff]
      %v175 = vld [vmem:[%s165 + $0x18] sm:$0xff]
      %v176 = vld [vmem:[%s165 + $0x20] sm:$0xff]
      %v177 = vld [vmem:[%s165 + $0x28] sm:$0xff]
      %v178 = vld [vmem:[%s165 + $0x30] sm:$0xff]
      %v179 = vld [vmem:[%s165 + $0x38] sm:$0xff]
      %v180 = vld [vmem:[%s165 + $0x40] sm:$0xff]
      %v181 = vld [vmem:[%s165 + $0x48] sm:$0xff]
      %v182 = vld [vmem:[%s165 + $0x50] sm:$0xff]
      %v183 = vld [vmem:[%s165 + $0x58] sm:$0xff]
      %v184 = vld [vmem:[%s165 + $0x60] sm:$0xff]
      %v185 = vld [vmem:[%s165 + $0x68] sm:$0xff]
      %v186 = vld [vmem:[%s165 + $0x70] sm:$0xff]
      %v187 = vld [vmem:[%s165 + $0x78] sm:$0xff]
      %v188 = vld [vmem:[%s165 + $0x80] sm:$0xff]
      %v189 = vld [vmem:[%s165 + $0x88] sm:$0xff]
      %v190 = vld [vmem:[%s165 + $0x90] sm:$0xff]
      %v191 = vld [vmem:[%s165 + $0x98] sm:$0xff]
      %v192 = vld [vmem:[%s165 + $0xa0] sm:$0xff]
      %v193 = vld [vmem:[%s165 + $0xa8] sm:$0xff]
      %v194 = vld [vmem:[%s165 + $0xb0] sm:$0xff]
      %v195 = vld [vmem:[%s165 + $0xb8] sm:$0xff]
      %v196 = vld [vmem:[%s165 + $0xc0] sm:$0xff]
      %v197 = vld [vmem:[%s165 + $0xc8] sm:$0xff]
      %v198 = vld [vmem:[%s165 + $0xd0] sm:$0xff]
      %v199 = vld [vmem:[%s165 + $0xd8] sm:$0xff]
      %v200 = vpack.c.bf16 %v173, %v172
      %v201 = vpack.c.bf16 %v175, %v174
      %v202 = vpack.c.bf16 %v177, %v176
      %v203 = vpack.c.bf16 %v179, %v178
      %v204 = vpack.c.bf16 %v181, %v180
      %v205 = vpack.c.bf16 %v183, %v182
      %v206 = vpack.c.bf16 %v185, %v184
      %v207 = vpack.c.bf16 %v187, %v186
      %v208 = vpack.c.bf16 %v189, %v188
      %v209 = vpack.c.bf16 %v191, %v190
      %v210 = vpack.c.bf16 %v193, %v192
      %v211 = vpack.c.bf16 %v195, %v194
      %v212 = vpack.c.bf16 %v197, %v196
      %v213 = vpack.c.bf16 %v199, %v198
      %v214 = vld [vmem:[%s1] sm:$0x3]
      %v215 = vld [vmem:[%s165 + $0x1] sm:$0xff]
      %v216 = vld [vmem:[%s165 + $0x9] sm:$0xff]
      %v217 = vld [vmem:[%s165 + $0x11] sm:$0xff]
      %v218 = vld [vmem:[%s165 + $0x19] sm:$0xff]
      %v219 = vld [vmem:[%s165 + $0x21] sm:$0xff]
      %v220 = vld [vmem:[%s165 + $0x29] sm:$0xff]
      %v221 = vld [vmem:[%s165 + $0x31] sm:$0xff]
      %v222 = vld [vmem:[%s165 + $0x39] sm:$0xff]
      %v223 = vld [vmem:[%s165 + $0x41] sm:$0xff]
      %v224 = vld [vmem:[%s165 + $0x49] sm:$0xff]
      %v225 = vld [vmem:[%s165 + $0x51] sm:$0xff]
      %v226 = vld [vmem:[%s165 + $0x59] sm:$0xff]
      %v227 = vld [vmem:[%s165 + $0x61] sm:$0xff]
      %v228 = vld [vmem:[%s165 + $0x69] sm:$0xff]
      %v229 = vld [vmem:[%s165 + $0x71] sm:$0xff]
      %v230 = vld [vmem:[%s165 + $0x79] sm:$0xff]
      %v231 = vld [vmem:[%s165 + $0x81] sm:$0xff]
      %v232 = vld [vmem:[%s165 + $0x89] sm:$0xff]
      %v233 = vld [vmem:[%s165 + $0x91] sm:$0xff]
      %v234 = vld [vmem:[%s165 + $0x99] sm:$0xff]
      %v235 = vld [vmem:[%s165 + $0xa1] sm:$0xff]
      %v236 = vld [vmem:[%s165 + $0xa9] sm:$0xff]
      %v237 = vld [vmem:[%s165 + $0xb1] sm:$0xff]
      %v238 = vld [vmem:[%s165 + $0xb9] sm:$0xff]
      %v239 = vld [vmem:[%s165 + $0xc1] sm:$0xff]
      %v240 = vld [vmem:[%s165 + $0xc9] sm:$0xff]
      %v241 = vld [vmem:[%s165 + $0xd1] sm:$0xff]
      %v242 = vld [vmem:[%s165 + $0xd9] sm:$0xff]
      %v243 = vpack.c.bf16 %v216, %v215
      %v244 = vpack.c.bf16 %v218, %v217
      %v245 = vpack.c.bf16 %v220, %v219
      %v246 = vpack.c.bf16 %v222, %v221
      %v247 = vpack.c.bf16 %v224, %v223
      %v248 = vpack.c.bf16 %v226, %v225
      %v249 = vpack.c.bf16 %v228, %v227
      %v250 = vpack.c.bf16 %v230, %v229
      %v251 = vpack.c.bf16 %v232, %v231
      %v252 = vpack.c.bf16 %v234, %v233
      %v253 = vpack.c.bf16 %v236, %v235
      %v254 = vpack.c.bf16 %v238, %v237
      %v255 = vpack.c.bf16 %v240, %v239
      %v256 = vpack.c.bf16 %v242, %v241
      %s257 = scalar_lea.vmem %s1, 2
      %v258 = vld [vmem:[%s257] sm:$0x3]
      %vm259 = vcmask 31744
      %v261 = vsel %vm259, %v243, 0
      %v264 = vsel %vm259, %v244, 0
      %v267 = vsel %vm259, %v245, 0
      %v270 = vsel %vm259, %v246, 0
      %v273 = vsel %vm259, %v247, 0
      %v276 = vsel %vm259, %v248, 0
      %v279 = vsel %vm259, %v249, 0
      %v282 = vsel %vm259, %v250, 0
      %v285 = vsel %vm259, %v251, 0
      %v288 = vsel %vm259, %v252, 0
      %v291 = vsel %vm259, %v253, 0
      %v294 = vsel %vm259, %v254, 0
      %v297 = vsel %vm259, %v255, 0
      %v300 = vsel %vm259, %v256, 0
      %vm302 = vcmask 1041408
      %v304 = vsel %vm302, %v258, 0
      %306 = vmatprep.subr.bf16.mxu0 0
      %307 = vmatpush1.bf16.msra.mxu0 0
      %308 = vmatprep.subr.bf16.mxu0 0
      %309 = vmatpush1.bf16.msra.mxu0 0
      %310 = vmatprep.subr.bf16.mxu0 0
      %311 = vmatpush1.bf16.msra.mxu0 0
      %312 = vmatprep.subr.bf16.mxu0 0
      %313 = vmatpush1.bf16.msra.mxu0 0
      %314 = vmatprep.subr.bf16.mxu0 0
      %315 = vmatpush1.bf16.msra.mxu0 0
      %316 = vmatprep.subr.bf16.mxu0 0
      %317 = vmatpush1.bf16.msra.mxu0 0
      %318 = vmatprep.subr.bf16.mxu0 0
      %319 = vmatpush1.bf16.msra.mxu0 0
      %320 = vmatprep.subr.bf16.mxu0 0
      %321 = vmatpush1.bf16.msra.mxu0 %v304
      %322 = vmatprep.subr.bf16.mxu0 0
      %323 = vmatpush2.bf16.msra.mxu0 0
      %324 = vmatprep.subr.bf16.mxu0 0
      %325 = vmatpush2.bf16.msra.mxu0 0
      %326 = vmatprep.subr.bf16.mxu0 0
      %327 = vmatpush2.bf16.msra.mxu0 0
      %328 = vmatprep.subr.bf16.mxu0 0
      %329 = vmatpush2.bf16.msra.mxu0 0
      %330 = vmatprep.subr.bf16.mxu0 0
      %331 = vmatpush2.bf16.msra.mxu0 0
      %332 = vmatprep.subr.bf16.mxu0 0
      %333 = vmatpush2.bf16.msra.mxu0 0
      %334 = vmatprep.subr.bf16.mxu0 0
      %335 = vmatpush2.bf16.msra.mxu0 0
      %336 = vmatprep.subr.bf16.mxu0 0
      %337 = vmatpush2.bf16.msra.mxu0 0
      %338 = vmatprep.mubr.bf16.mxu0 0
      %339 = vmatmul.mubr.bf16.gmra.mxu0 %v261
      %v340 = vpop.f32.mrf.mxu0
      %v341 = vadd.f32 0.0, %v340
      %v342 = vpop.f32.mrf.mxu0
      %v343 = vpop.f32.mrf.mxu0
      %v344 = vadd.f32 0.0, %v343
      %v345 = vpop.f32.mrf.mxu0
      %346 = vmatprep.mubr.bf16.mxu0 0
      %347 = vmatmul.mubr.bf16.gmra.mxu0 %v264
      %v348 = vpop.f32.mrf.mxu0
      %v349 = vadd.f32 0.0, %v348
      %v350 = vpop.f32.mrf.mxu0
      %v351 = vpop.f32.mrf.mxu0
      %v352 = vadd.f32 0.0, %v351
      %v353 = vpop.f32.mrf.mxu0
      %354 = vmatprep.mubr.bf16.mxu0 0
      %355 = vmatmul.mubr.bf16.gmra.mxu0 %v267
      %v356 = vpop.f32.mrf.mxu0
      %v357 = vadd.f32 0.0, %v356
      %v358 = vpop.f32.mrf.mxu0
      %v359 = vpop.f32.mrf.mxu0
      %v360 = vadd.f32 0.0, %v359
      %v361 = vpop.f32.mrf.mxu0
      %362 = vmatprep.mubr.bf16.mxu0 0
      %363 = vmatmul.mubr.bf16.gmra.mxu0 %v270
      %v364 = vpop.f32.mrf.mxu0
      %v365 = vadd.f32 0.0, %v364
      %v366 = vpop.f32.mrf.mxu0
      %v367 = vpop.f32.mrf.mxu0
      %v368 = vadd.f32 0.0, %v367
      %v369 = vpop.f32.mrf.mxu0
      %370 = vmatprep.mubr.bf16.mxu0 0
      %371 = vmatmul.mubr.bf16.gmra.mxu0 %v273
      %v372 = vpop.f32.mrf.mxu0
      %v373 = vadd.f32 0.0, %v372
      %v374 = vpop.f32.mrf.mxu0
      %v375 = vpop.f32.mrf.mxu0
      %v376 = vadd.f32 0.0, %v375
      %v377 = vpop.f32.mrf.mxu0
      %378 = vmatprep.mubr.bf16.mxu0 0
      %379 = vmatmul.mubr.bf16.gmra.mxu0 %v276
      %v380 = vpop.f32.mrf.mxu0
      %v381 = vadd.f32 0.0, %v380
      %v382 = vpop.f32.mrf.mxu0
      %v383 = vpop.f32.mrf.mxu0
      %v384 = vadd.f32 0.0, %v383
      %v385 = vpop.f32.mrf.mxu0
      %386 = vmatprep.mubr.bf16.mxu0 0
      %387 = vmatmul.mubr.bf16.gmra.mxu0 %v279
      %v388 = vpop.f32.mrf.mxu0
      %v389 = vadd.f32 0.0, %v388
      %v390 = vpop.f32.mrf.mxu0
      %v391 = vpop.f32.mrf.mxu0
      %v392 = vadd.f32 0.0, %v391
      %v393 = vpop.f32.mrf.mxu0
      %394 = vmatprep.mubr.bf16.mxu0 0
      %395 = vmatmul.mubr.bf16.gmra.mxu0 %v282
      %v396 = vpop.f32.mrf.mxu0
      %v397 = vadd.f32 0.0, %v396
      %v398 = vpop.f32.mrf.mxu0
      %v399 = vpop.f32.mrf.mxu0
      %v400 = vadd.f32 0.0, %v399
      %v401 = vpop.f32.mrf.mxu0
      %402 = vmatprep.mubr.bf16.mxu0 0
      %403 = vmatmul.mubr.bf16.gmra.mxu0 %v285
      %v404 = vpop.f32.mrf.mxu0
      %v405 = vadd.f32 0.0, %v404
      %v406 = vpop.f32.mrf.mxu0
      %v407 = vpop.f32.mrf.mxu0
      %v408 = vadd.f32 0.0, %v407
      %v409 = vpop.f32.mrf.mxu0
      %410 = vmatprep.mubr.bf16.mxu0 0
      %411 = vmatmul.mubr.bf16.gmra.mxu0 %v288
      %v412 = vpop.f32.mrf.mxu0
      %v413 = vadd.f32 0.0, %v412
      %v414 = vpop.f32.mrf.mxu0
      %v415 = vpop.f32.mrf.mxu0
      %v416 = vadd.f32 0.0, %v415
      %v417 = vpop.f32.mrf.mxu0
      %418 = vmatprep.mubr.bf16.mxu0 0
      %419 = vmatmul.mubr.bf16.gmra.mxu0 %v291
      %v420 = vpop.f32.mrf.mxu0
      %v421 = vadd.f32 0.0, %v420
      %v422 = vpop.f32.mrf.mxu0
      %v423 = vpop.f32.mrf.mxu0
      %v424 = vadd.f32 0.0, %v423
      %v425 = vpop.f32.mrf.mxu0
      %426 = vmatprep.mubr.bf16.mxu0 0
      %427 = vmatmul.mubr.bf16.gmra.mxu0 %v294
      %v428 = vpop.f32.mrf.mxu0
      %v429 = vadd.f32 0.0, %v428
      %v430 = vpop.f32.mrf.mxu0
      %v431 = vpop.f32.mrf.mxu0
      %v432 = vadd.f32 0.0, %v431
      %v433 = vpop.f32.mrf.mxu0
      %434 = vmatprep.mubr.bf16.mxu0 0
      %435 = vmatmul.mubr.bf16.gmra.mxu0 %v297
      %v436 = vpop.f32.mrf.mxu0
      %v437 = vadd.f32 0.0, %v436
      %v438 = vpop.f32.mrf.mxu0
      %v439 = vpop.f32.mrf.mxu0
      %v440 = vadd.f32 0.0, %v439
      %v441 = vpop.f32.mrf.mxu0
      %442 = vmatprep.mubr.bf16.mxu0 0
      %443 = vmatmul.mubr.bf16.gmra.mxu0 %v300
      %v444 = vpop.f32.mrf.mxu0
      %v445 = vadd.f32 0.0, %v444
      %v446 = vpop.f32.mrf.mxu0
      %v447 = vpop.f32.mrf.mxu0
      %v448 = vadd.f32 0.0, %v447
      %v449 = vpop.f32.mrf.mxu0
      %450 = vdwg.mxu0
      %v452 = vsel %vm259, %v200, 0
      %v455 = vsel %vm259, %v201, 0
      %v458 = vsel %vm259, %v202, 0
      %v461 = vsel %vm259, %v203, 0
      %v464 = vsel %vm259, %v204, 0
      %v467 = vsel %vm259, %v205, 0
      %v470 = vsel %vm259, %v206, 0
      %v473 = vsel %vm259, %v207, 0
      %v476 = vsel %vm259, %v208, 0
      %v479 = vsel %vm259, %v209, 0
      %v482 = vsel %vm259, %v210, 0
      %v485 = vsel %vm259, %v211, 0
      %v488 = vsel %vm259, %v212, 0
      %v491 = vsel %vm259, %v213, 0
      %v494 = vsel %vm302, %v214, 0
      %496 = vmatprep.subr.bf16.mxu0 0
      %497 = vmatpush1.bf16.msra.mxu0 0
      %498 = vmatprep.subr.bf16.mxu0 0
      %499 = vmatpush1.bf16.msra.mxu0 0
      %500 = vmatprep.subr.bf16.mxu0 0
      %501 = vmatpush1.bf16.msra.mxu0 0
      %502 = vmatprep.subr.bf16.mxu0 0
      %503 = vmatpush1.bf16.msra.mxu0 0
      %504 = vmatprep.subr.bf16.mxu0 0
      %505 = vmatpush1.bf16.msra.mxu0 0
      %506 = vmatprep.subr.bf16.mxu0 0
      %507 = vmatpush1.bf16.msra.mxu0 0
      %508 = vmatprep.subr.bf16.mxu0 0
      %509 = vmatpush1.bf16.msra.mxu0 0
      %510 = vmatprep.subr.bf16.mxu0 0
      %511 = vmatpush1.bf16.msra.mxu0 %v494
      %512 = vmatprep.subr.bf16.mxu0 0
      %513 = vmatpush2.bf16.msra.mxu0 0
      %514 = vmatprep.subr.bf16.mxu0 0
      %515 = vmatpush2.bf16.msra.mxu0 0
      %516 = vmatprep.subr.bf16.mxu0 0
      %517 = vmatpush2.bf16.msra.mxu0 0
      %518 = vmatprep.subr.bf16.mxu0 0
      %519 = vmatpush2.bf16.msra.mxu0 0
      %520 = vmatprep.subr.bf16.mxu0 0
      %521 = vmatpush2.bf16.msra.mxu0 0
      %522 = vmatprep.subr.bf16.mxu0 0
      %523 = vmatpush2.bf16.msra.mxu0 0
      %524 = vmatprep.subr.bf16.mxu0 0
      %525 = vmatpush2.bf16.msra.mxu0 0
      %526 = vmatprep.subr.bf16.mxu0 0
      %527 = vmatpush2.bf16.msra.mxu0 0
      %528 = vmatprep.mubr.bf16.mxu0 0
      %529 = vmatmul.mubr.bf16.gmra.mxu0 %v452
      %v530 = vpop.f32.mrf.mxu0
      %v531 = vadd.f32 %v341, %v530
      %v532 = vpop.f32.mrf.mxu0
      %v533 = vpop.f32.mrf.mxu0
      %v534 = vadd.f32 %v344, %v533
      %v535 = vpop.f32.mrf.mxu0
      %536 = vmatprep.mubr.bf16.mxu0 0
      %537 = vmatmul.mubr.bf16.gmra.mxu0 %v455
      %v538 = vpop.f32.mrf.mxu0
      %v539 = vadd.f32 %v349, %v538
      %v540 = vpop.f32.mrf.mxu0
      %v541 = vpop.f32.mrf.mxu0
      %v542 = vadd.f32 %v352, %v541
      %v543 = vpop.f32.mrf.mxu0
      %544 = vmatprep.mubr.bf16.mxu0 0
      %545 = vmatmul.mubr.bf16.gmra.mxu0 %v458
      %v546 = vpop.f32.mrf.mxu0
      %v547 = vadd.f32 %v357, %v546
      %v548 = vpop.f32.mrf.mxu0
      %v549 = vpop.f32.mrf.mxu0
      %v550 = vadd.f32 %v360, %v549
      %v551 = vpop.f32.mrf.mxu0
      %552 = vmatprep.mubr.bf16.mxu0 0
      %553 = vmatmul.mubr.bf16.gmra.mxu0 %v461
      %v554 = vpop.f32.mrf.mxu0
      %v555 = vadd.f32 %v365, %v554
      %v556 = vpop.f32.mrf.mxu0
      %v557 = vpop.f32.mrf.mxu0
      %v558 = vadd.f32 %v368, %v557
      %v559 = vpop.f32.mrf.mxu0
      %560 = vmatprep.mubr.bf16.mxu0 0
      %561 = vmatmul.mubr.bf16.gmra.mxu0 %v464
      %v562 = vpop.f32.mrf.mxu0
      %v563 = vadd.f32 %v373, %v562
      %v564 = vpop.f32.mrf.mxu0
      %v565 = vpop.f32.mrf.mxu0
      %v566 = vadd.f32 %v376, %v565
      %v567 = vpop.f32.mrf.mxu0
      %568 = vmatprep.mubr.bf16.mxu0 0
      %569 = vmatmul.mubr.bf16.gmra.mxu0 %v467
      %v570 = vpop.f32.mrf.mxu0
      %v571 = vadd.f32 %v381, %v570
      %v572 = vpop.f32.mrf.mxu0
      %v573 = vpop.f32.mrf.mxu0
      %v574 = vadd.f32 %v384, %v573
      %v575 = vpop.f32.mrf.mxu0
      %576 = vmatprep.mubr.bf16.mxu0 0
      %577 = vmatmul.mubr.bf16.gmra.mxu0 %v470
      %v578 = vpop.f32.mrf.mxu0
      %v579 = vadd.f32 %v389, %v578
      %v580 = vpop.f32.mrf.mxu0
      %v581 = vpop.f32.mrf.mxu0
      %v582 = vadd.f32 %v392, %v581
      %v583 = vpop.f32.mrf.mxu0
      %584 = vmatprep.mubr.bf16.mxu0 0
      %585 = vmatmul.mubr.bf16.gmra.mxu0 %v473
      %v586 = vpop.f32.mrf.mxu0
      %v587 = vadd.f32 %v397, %v586
      %v588 = vpop.f32.mrf.mxu0
      %v589 = vpop.f32.mrf.mxu0
      %v590 = vadd.f32 %v400, %v589
      %v591 = vpop.f32.mrf.mxu0
      %592 = vmatprep.mubr.bf16.mxu0 0
      %593 = vmatmul.mubr.bf16.gmra.mxu0 %v476
      %v594 = vpop.f32.mrf.mxu0
      %v595 = vadd.f32 %v405, %v594
      %v596 = vpop.f32.mrf.mxu0
      %v597 = vpop.f32.mrf.mxu0
      %v598 = vadd.f32 %v408, %v597
      %v599 = vpop.f32.mrf.mxu0
      %600 = vmatprep.mubr.bf16.mxu0 0
      %601 = vmatmul.mubr.bf16.gmra.mxu0 %v479
      %v602 = vpop.f32.mrf.mxu0
      %v603 = vadd.f32 %v413, %v602
      %v604 = vpop.f32.mrf.mxu0
      %v605 = vpop.f32.mrf.mxu0
      %v606 = vadd.f32 %v416, %v605
      %v607 = vpop.f32.mrf.mxu0
      %608 = vmatprep.mubr.bf16.mxu0 0
      %609 = vmatmul.mubr.bf16.gmra.mxu0 %v482
      %v610 = vpop.f32.mrf.mxu0
      %v611 = vadd.f32 %v421, %v610
      %v612 = vpop.f32.mrf.mxu0
      %v613 = vpop.f32.mrf.mxu0
      %v614 = vadd.f32 %v424, %v613
      %v615 = vpop.f32.mrf.mxu0
      %616 = vmatprep.mubr.bf16.mxu0 0
      %617 = vmatmul.mubr.bf16.gmra.mxu0 %v485
      %v618 = vpop.f32.mrf.mxu0
      %v619 = vadd.f32 %v429, %v618
      %v620 = vpop.f32.mrf.mxu0
      %v621 = vpop.f32.mrf.mxu0
      %v622 = vadd.f32 %v432, %v621
      %v623 = vpop.f32.mrf.mxu0
      %624 = vmatprep.mubr.bf16.mxu0 0
      %625 = vmatmul.mubr.bf16.gmra.mxu0 %v488
      %v626 = vpop.f32.mrf.mxu0
      %v627 = vadd.f32 %v437, %v626
      %v628 = vpop.f32.mrf.mxu0
      %v629 = vpop.f32.mrf.mxu0
      %v630 = vadd.f32 %v440, %v629
      %v631 = vpop.f32.mrf.mxu0
      %632 = vmatprep.mubr.bf16.mxu0 0
      %633 = vmatmul.mubr.bf16.gmra.mxu0 %v491
      %v634 = vpop.f32.mrf.mxu0
      %v635 = vadd.f32 %v445, %v634
      %v636 = vpop.f32.mrf.mxu0
      %v637 = vpop.f32.mrf.mxu0
      %v638 = vadd.f32 %v448, %v637
      %v639 = vpop.f32.mrf.mxu0
      %640 = vdwg.mxu0
      %v641 = vld [vmem:[%s165 + $0x2] sm:$0xff]
      %v642 = vld [vmem:[%s165 + $0xa] sm:$0xff]
      %v643 = vld [vmem:[%s165 + $0x12] sm:$0xff]
      %v644 = vld [vmem:[%s165 + $0x1a] sm:$0xff]
      %v645 = vld [vmem:[%s165 + $0x22] sm:$0xff]
      %v646 = vld [vmem:[%s165 + $0x2a] sm:$0xff]
      %v647 = vld [vmem:[%s165 + $0x32] sm:$0xff]
      %v648 = vld [vmem:[%s165 + $0x3a] sm:$0xff]
      %v649 = vld [vmem:[%s165 + $0x42] sm:$0xff]
      %v650 = vld [vmem:[%s165 + $0x4a] sm:$0xff]
      %v651 = vld [vmem:[%s165 + $0x52] sm:$0xff]
      %v652 = vld [vmem:[%s165 + $0x5a] sm:$0xff]
      %v653 = vld [vmem:[%s165 + $0x62] sm:$0xff]
      %v654 = vld [vmem:[%s165 + $0x6a] sm:$0xff]
      %v655 = vld [vmem:[%s165 + $0x72] sm:$0xff]
      %v656 = vld [vmem:[%s165 + $0x7a] sm:$0xff]
      %v657 = vld [vmem:[%s165 + $0x82] sm:$0xff]
      %v658 = vld [vmem:[%s165 + $0x8a] sm:$0xff]
      %v659 = vld [vmem:[%s165 + $0x92] sm:$0xff]
      %v660 = vld [vmem:[%s165 + $0x9a] sm:$0xff]
      %v661 = vld [vmem:[%s165 + $0xa2] sm:$0xff]
      %v662 = vld [vmem:[%s165 + $0xaa] sm:$0xff]
      %v663 = vld [vmem:[%s165 + $0xb2] sm:$0xff]
      %v664 = vld [vmem:[%s165 + $0xba] sm:$0xff]
      %v665 = vld [vmem:[%s165 + $0xc2] sm:$0xff]
      %v666 = vld [vmem:[%s165 + $0xca] sm:$0xff]
      %v667 = vld [vmem:[%s165 + $0xd2] sm:$0xff]
      %v668 = vld [vmem:[%s165 + $0xda] sm:$0xff]
      %v669 = vpack.c.bf16 %v642, %v641
      %v670 = vpack.c.bf16 %v644, %v643
      %v671 = vpack.c.bf16 %v646, %v645
      %v672 = vpack.c.bf16 %v648, %v647
      %v673 = vpack.c.bf16 %v650, %v649
      %v674 = vpack.c.bf16 %v652, %v651
      %v675 = vpack.c.bf16 %v654, %v653
      %v676 = vpack.c.bf16 %v656, %v655
      %v677 = vpack.c.bf16 %v658, %v657
      %v678 = vpack.c.bf16 %v660, %v659
      %v679 = vpack.c.bf16 %v662, %v661
      %v680 = vpack.c.bf16 %v664, %v663
      %v681 = vpack.c.bf16 %v666, %v665
      %v682 = vpack.c.bf16 %v668, %v667
      %s683 = scalar_lea.vmem %s1, 4
      %v684 = vld [vmem:[%s683] sm:$0x3]
      %v686 = vsel %vm259, %v669, 0
      %v689 = vsel %vm259, %v670, 0
      %v692 = vsel %vm259, %v671, 0
      %v695 = vsel %vm259, %v672, 0
      %v698 = vsel %vm259, %v673, 0
      %v701 = vsel %vm259, %v674, 0
      %v704 = vsel %vm259, %v675, 0
      %v707 = vsel %vm259, %v676, 0
      %v710 = vsel %vm259, %v677, 0
      %v713 = vsel %vm259, %v678, 0
      %v716 = vsel %vm259, %v679, 0
      %v719 = vsel %vm259, %v680, 0
      %v722 = vsel %vm259, %v681, 0
      %v725 = vsel %vm259, %v682, 0
      %v728 = vsel %vm302, %v684, 0
      %730 = vmatprep.subr.bf16.mxu0 0
      %731 = vmatpush1.bf16.msra.mxu0 0
      %732 = vmatprep.subr.bf16.mxu0 0
      %733 = vmatpush1.bf16.msra.mxu0 0
      %734 = vmatprep.subr.bf16.mxu0 0
      %735 = vmatpush1.bf16.msra.mxu0 0
      %736 = vmatprep.subr.bf16.mxu0 0
      %737 = vmatpush1.bf16.msra.mxu0 0
      %738 = vmatprep.subr.bf16.mxu0 0
      %739 = vmatpush1.bf16.msra.mxu0 0
      %740 = vmatprep.subr.bf16.mxu0 0
      %741 = vmatpush1.bf16.msra.mxu0 0
      %742 = vmatprep.subr.bf16.mxu0 0
      %743 = vmatpush1.bf16.msra.mxu0 0
      %744 = vmatprep.subr.bf16.mxu0 0
      %745 = vmatpush1.bf16.msra.mxu0 %v728
      %746 = vmatprep.subr.bf16.mxu0 0
      %747 = vmatpush2.bf16.msra.mxu0 0
      %748 = vmatprep.subr.bf16.mxu0 0
      %749 = vmatpush2.bf16.msra.mxu0 0
      %750 = vmatprep.subr.bf16.mxu0 0
      %751 = vmatpush2.bf16.msra.mxu0 0
      %752 = vmatprep.subr.bf16.mxu0 0
      %753 = vmatpush2.bf16.msra.mxu0 0
      %754 = vmatprep.subr.bf16.mxu0 0
      %755 = vmatpush2.bf16.msra.mxu0 0
      %756 = vmatprep.subr.bf16.mxu0 0
      %757 = vmatpush2.bf16.msra.mxu0 0
      %758 = vmatprep.subr.bf16.mxu0 0
      %759 = vmatpush2.bf16.msra.mxu0 0
      %760 = vmatprep.subr.bf16.mxu0 0
      %761 = vmatpush2.bf16.msra.mxu0 0
      %762 = vmatprep.mubr.bf16.mxu0 0
      %763 = vmatmul.mubr.bf16.gmra.mxu0 %v686
      %v764 = vpop.f32.mrf.mxu0
      %v765 = vadd.f32 0.0, %v764
      %v766 = vpop.f32.mrf.mxu0
      %v767 = vpop.f32.mrf.mxu0
      %v768 = vadd.f32 0.0, %v767
      %v769 = vpop.f32.mrf.mxu0
      %770 = vmatprep.mubr.bf16.mxu0 0
      %771 = vmatmul.mubr.bf16.gmra.mxu0 %v689
      %v772 = vpop.f32.mrf.mxu0
      %v773 = vadd.f32 0.0, %v772
      %v774 = vpop.f32.mrf.mxu0
      %v775 = vpop.f32.mrf.mxu0
      %v776 = vadd.f32 0.0, %v775
      %v777 = vpop.f32.mrf.mxu0
      %778 = vmatprep.mubr.bf16.mxu0 0
      %779 = vmatmul.mubr.bf16.gmra.mxu0 %v692
      %v780 = vpop.f32.mrf.mxu0
      %v781 = vadd.f32 0.0, %v780
      %v782 = vpop.f32.mrf.mxu0
      %v783 = vpop.f32.mrf.mxu0
      %v784 = vadd.f32 0.0, %v783
      %v785 = vpop.f32.mrf.mxu0
      %786 = vmatprep.mubr.bf16.mxu0 0
      %787 = vmatmul.mubr.bf16.gmra.mxu0 %v695
      %v788 = vpop.f32.mrf.mxu0
      %v789 = vadd.f32 0.0, %v788
      %v790 = vpop.f32.mrf.mxu0
      %v791 = vpop.f32.mrf.mxu0
      %v792 = vadd.f32 0.0, %v791
      %v793 = vpop.f32.mrf.mxu0
      %794 = vmatprep.mubr.bf16.mxu0 0
      %795 = vmatmul.mubr.bf16.gmra.mxu0 %v698
      %v796 = vpop.f32.mrf.mxu0
      %v797 = vadd.f32 0.0, %v796
      %v798 = vpop.f32.mrf.mxu0
      %v799 = vpop.f32.mrf.mxu0
      %v800 = vadd.f32 0.0, %v799
      %v801 = vpop.f32.mrf.mxu0
      %802 = vmatprep.mubr.bf16.mxu0 0
      %803 = vmatmul.mubr.bf16.gmra.mxu0 %v701
      %v804 = vpop.f32.mrf.mxu0
      %v805 = vadd.f32 0.0, %v804
      %v806 = vpop.f32.mrf.mxu0
      %v807 = vpop.f32.mrf.mxu0
      %v808 = vadd.f32 0.0, %v807
      %v809 = vpop.f32.mrf.mxu0
      %810 = vmatprep.mubr.bf16.mxu0 0
      %811 = vmatmul.mubr.bf16.gmra.mxu0 %v704
      %v812 = vpop.f32.mrf.mxu0
      %v813 = vadd.f32 0.0, %v812
      %v814 = vpop.f32.mrf.mxu0
      %v815 = vpop.f32.mrf.mxu0
      %v816 = vadd.f32 0.0, %v815
      %v817 = vpop.f32.mrf.mxu0
      %818 = vmatprep.mubr.bf16.mxu0 0
      %819 = vmatmul.mubr.bf16.gmra.mxu0 %v707
      %v820 = vpop.f32.mrf.mxu0
      %v821 = vadd.f32 0.0, %v820
      %v822 = vpop.f32.mrf.mxu0
      %v823 = vpop.f32.mrf.mxu0
      %v824 = vadd.f32 0.0, %v823
      %v825 = vpop.f32.mrf.mxu0
      %826 = vmatprep.mubr.bf16.mxu0 0
      %827 = vmatmul.mubr.bf16.gmra.mxu0 %v710
      %v828 = vpop.f32.mrf.mxu0
      %v829 = vadd.f32 0.0, %v828
      %v830 = vpop.f32.mrf.mxu0
      %v831 = vpop.f32.mrf.mxu0
      %v832 = vadd.f32 0.0, %v831
      %v833 = vpop.f32.mrf.mxu0
      %834 = vmatprep.mubr.bf16.mxu0 0
      %835 = vmatmul.mubr.bf16.gmra.mxu0 %v713
      %v836 = vpop.f32.mrf.mxu0
      %v837 = vadd.f32 0.0, %v836
      %v838 = vpop.f32.mrf.mxu0
      %v839 = vpop.f32.mrf.mxu0
      %v840 = vadd.f32 0.0, %v839
      %v841 = vpop.f32.mrf.mxu0
      %842 = vmatprep.mubr.bf16.mxu0 0
      %843 = vmatmul.mubr.bf16.gmra.mxu0 %v716
      %v844 = vpop.f32.mrf.mxu0
      %v845 = vadd.f32 0.0, %v844
      %v846 = vpop.f32.mrf.mxu0
      %v847 = vpop.f32.mrf.mxu0
      %v848 = vadd.f32 0.0, %v847
      %v849 = vpop.f32.mrf.mxu0
      %850 = vmatprep.mubr.bf16.mxu0 0
      %851 = vmatmul.mubr.bf16.gmra.mxu0 %v719
      %v852 = vpop.f32.mrf.mxu0
      %v853 = vadd.f32 0.0, %v852
      %v854 = vpop.f32.mrf.mxu0
      %v855 = vpop.f32.mrf.mxu0
      %v856 = vadd.f32 0.0, %v855
      %v857 = vpop.f32.mrf.mxu0
      %858 = vmatprep.mubr.bf16.mxu0 0
      %859 = vmatmul.mubr.bf16.gmra.mxu0 %v722
      %v860 = vpop.f32.mrf.mxu0
      %v861 = vadd.f32 0.0, %v860
      %v862 = vpop.f32.mrf.mxu0
      %v863 = vpop.f32.mrf.mxu0
      %v864 = vadd.f32 0.0, %v863
      %v865 = vpop.f32.mrf.mxu0
      %866 = vmatprep.mubr.bf16.mxu0 0
      %867 = vmatmul.mubr.bf16.gmra.mxu0 %v725
      %v868 = vpop.f32.mrf.mxu0
      %v869 = vadd.f32 0.0, %v868
      %v870 = vpop.f32.mrf.mxu0
      %v871 = vpop.f32.mrf.mxu0
      %v872 = vadd.f32 0.0, %v871
      %v873 = vpop.f32.mrf.mxu0
      %874 = vdwg.mxu0
      %v875 = vadd.f32 %v531, %v765
      %v876 = vadd.f32 %v534, %v768
      %v877 = vadd.f32 %v539, %v773
      %v878 = vadd.f32 %v542, %v776
      %v879 = vadd.f32 %v547, %v781
      %v880 = vadd.f32 %v550, %v784
      %v881 = vadd.f32 %v555, %v789
      %v882 = vadd.f32 %v558, %v792
      %v883 = vadd.f32 %v563, %v797
      %v884 = vadd.f32 %v566, %v800
      %v885 = vadd.f32 %v571, %v805
      %v886 = vadd.f32 %v574, %v808
      %v887 = vadd.f32 %v579, %v813
      %v888 = vadd.f32 %v582, %v816
      %v889 = vadd.f32 %v587, %v821
      %v890 = vadd.f32 %v590, %v824
      %v891 = vadd.f32 %v595, %v829
      %v892 = vadd.f32 %v598, %v832
      %v893 = vadd.f32 %v603, %v837
      %v894 = vadd.f32 %v606, %v840
      %v895 = vadd.f32 %v611, %v845
      %v896 = vadd.f32 %v614, %v848
      %v897 = vadd.f32 %v619, %v853
      %v898 = vadd.f32 %v622, %v856
      %v899 = vadd.f32 %v627, %v861
      %v900 = vadd.f32 %v630, %v864
      %v901 = vadd.f32 %v635, %v869
      %v902 = vadd.f32 %v638, %v872
      %v903 = vld [vmem:[%s165 + $0x10] sm:$0xff]
      %v904 = vld [vmem:[%s165 + $0x18] sm:$0xff]
      %v905 = vld [vmem:[%s165 + $0x20] sm:$0xff]
      %v906 = vld [vmem:[%s165 + $0x28] sm:$0xff]
      %v907 = vld [vmem:[%s165 + $0x30] sm:$0xff]
      %v908 = vld [vmem:[%s165 + $0x38] sm:$0xff]
      %v909 = vld [vmem:[%s165 + $0x40] sm:$0xff]
      %v910 = vld [vmem:[%s165 + $0x48] sm:$0xff]
      %v911 = vld [vmem:[%s165 + $0x50] sm:$0xff]
      %v912 = vld [vmem:[%s165 + $0x58] sm:$0xff]
      %v913 = vld [vmem:[%s165 + $0x60] sm:$0xff]
      %v914 = vld [vmem:[%s165 + $0x68] sm:$0xff]
      %v915 = vld [vmem:[%s165 + $0x70] sm:$0xff]
      %v916 = vld [vmem:[%s165 + $0x78] sm:$0xff]
      %v917 = vld [vmem:[%s165 + $0x80] sm:$0xff]
      %v918 = vld [vmem:[%s165 + $0x88] sm:$0xff]
      %v919 = vld [vmem:[%s165 + $0x90] sm:$0xff]
      %v920 = vld [vmem:[%s165 + $0x98] sm:$0xff]
      %v921 = vld [vmem:[%s165 + $0xa0] sm:$0xff]
      %v922 = vld [vmem:[%s165 + $0xa8] sm:$0xff]
      %v923 = vld [vmem:[%s165 + $0xb0] sm:$0xff]
      %v924 = vld [vmem:[%s165 + $0xb8] sm:$0xff]
      %v925 = vld [vmem:[%s165 + $0xc0] sm:$0xff]
      %v926 = vld [vmem:[%s165 + $0xc8] sm:$0xff]
      %v927 = vld [vmem:[%s165 + $0xd0] sm:$0xff]
      %v928 = vld [vmem:[%s165 + $0xd8] sm:$0xff]
      %v929 = vld [vmem:[%s165 + $0xe0] sm:$0xff]
      %v930 = vld [vmem:[%s165 + $0xe8] sm:$0xff]
      %v931 = vpack.c.bf16 %v904, %v903
      %v932 = vpack.c.bf16 %v906, %v905
      %v933 = vpack.c.bf16 %v908, %v907
      %v934 = vpack.c.bf16 %v910, %v909
      %v935 = vpack.c.bf16 %v912, %v911
      %v936 = vpack.c.bf16 %v914, %v913
      %v937 = vpack.c.bf16 %v916, %v915
      %v938 = vpack.c.bf16 %v918, %v917
      %v939 = vpack.c.bf16 %v920, %v919
      %v940 = vpack.c.bf16 %v922, %v921
      %v941 = vpack.c.bf16 %v924, %v923
      %v942 = vpack.c.bf16 %v926, %v925
      %v943 = vpack.c.bf16 %v928, %v927
      %v944 = vpack.c.bf16 %v930, %v929
      %s945 = scalar_lea.vmem %s1, 6
      %v946 = vld [vmem:[%s945] sm:$0x3]
      %v948 = vsel %vm259, %v931, 0
      %v951 = vsel %vm259, %v932, 0
      %v954 = vsel %vm259, %v933, 0
      %v957 = vsel %vm259, %v934, 0
      %v960 = vsel %vm259, %v935, 0
      %v963 = vsel %vm259, %v936, 0
      %v966 = vsel %vm259, %v937, 0
      %v969 = vsel %vm259, %v938, 0
      %v972 = vsel %vm259, %v939, 0
      %v975 = vsel %vm259, %v940, 0
      %v978 = vsel %vm259, %v941, 0
      %v981 = vsel %vm259, %v942, 0
      %v984 = vsel %vm259, %v943, 0
      %v987 = vsel %vm259, %v944, 0
      %v990 = vsel %vm302, %v946, 0
      %992 = vmatprep.subr.bf16.mxu0 0
      %993 = vmatpush1.bf16.msra.mxu0 0
      %994 = vmatprep.subr.bf16.mxu0 0
      %995 = vmatpush1.bf16.msra.mxu0 0
      %996 = vmatprep.subr.bf16.mxu0 0
      %997 = vmatpush1.bf16.msra.mxu0 0
      %998 = vmatprep.subr.bf16.mxu0 0
      %999 = vmatpush1.bf16.msra.mxu0 0
      %1000 = vmatprep.subr.bf16.mxu0 0
      %1001 = vmatpush1.bf16.msra.mxu0 0
      %1002 = vmatprep.subr.bf16.mxu0 0
      %1003 = vmatpush1.bf16.msra.mxu0 0
      %1004 = vmatprep.subr.bf16.mxu0 0
      %1005 = vmatpush1.bf16.msra.mxu0 0
      %1006 = vmatprep.subr.bf16.mxu0 0
      %1007 = vmatpush1.bf16.msra.mxu0 %v990
      %1008 = vmatprep.subr.bf16.mxu0 0
      %1009 = vmatpush2.bf16.msra.mxu0 0
      %1010 = vmatprep.subr.bf16.mxu0 0
      %1011 = vmatpush2.bf16.msra.mxu0 0
      %1012 = vmatprep.subr.bf16.mxu0 0
      %1013 = vmatpush2.bf16.msra.mxu0 0
      %1014 = vmatprep.subr.bf16.mxu0 0
      %1015 = vmatpush2.bf16.msra.mxu0 0
      %1016 = vmatprep.subr.bf16.mxu0 0
      %1017 = vmatpush2.bf16.msra.mxu0 0
      %1018 = vmatprep.subr.bf16.mxu0 0
      %1019 = vmatpush2.bf16.msra.mxu0 0
      %1020 = vmatprep.subr.bf16.mxu0 0
      %1021 = vmatpush2.bf16.msra.mxu0 0
      %1022 = vmatprep.subr.bf16.mxu0 0
      %1023 = vmatpush2.bf16.msra.mxu0 0
      %1024 = vmatprep.mubr.bf16.mxu0 0
      %1025 = vmatmul.mubr.bf16.gmra.mxu0 %v948
      %v1026 = vpop.f32.mrf.mxu0
      %v1027 = vadd.f32 0.0, %v1026
      %v1028 = vpop.f32.mrf.mxu0
      %v1029 = vpop.f32.mrf.mxu0
      %v1030 = vadd.f32 0.0, %v1029
      %v1031 = vpop.f32.mrf.mxu0
      %1032 = vmatprep.mubr.bf16.mxu0 0
      %1033 = vmatmul.mubr.bf16.gmra.mxu0 %v951
      %v1034 = vpop.f32.mrf.mxu0
      %v1035 = vadd.f32 0.0, %v1034
      %v1036 = vpop.f32.mrf.mxu0
      %v1037 = vpop.f32.mrf.mxu0
      %v1038 = vadd.f32 0.0, %v1037
      %v1039 = vpop.f32.mrf.mxu0
      %1040 = vmatprep.mubr.bf16.mxu0 0
      %1041 = vmatmul.mubr.bf16.gmra.mxu0 %v954
      %v1042 = vpop.f32.mrf.mxu0
      %v1043 = vadd.f32 0.0, %v1042
      %v1044 = vpop.f32.mrf.mxu0
      %v1045 = vpop.f32.mrf.mxu0
      %v1046 = vadd.f32 0.0, %v1045
      %v1047 = vpop.f32.mrf.mxu0
      %1048 = vmatprep.mubr.bf16.mxu0 0
      %1049 = vmatmul.mubr.bf16.gmra.mxu0 %v957
      %v1050 = vpop.f32.mrf.mxu0
      %v1051 = vadd.f32 0.0, %v1050
      %v1052 = vpop.f32.mrf.mxu0
      %v1053 = vpop.f32.mrf.mxu0
      %v1054 = vadd.f32 0.0, %v1053
      %v1055 = vpop.f32.mrf.mxu0
      %1056 = vmatprep.mubr.bf16.mxu0 0
      %1057 = vmatmul.mubr.bf16.gmra.mxu0 %v960
      %v1058 = vpop.f32.mrf.mxu0
      %v1059 = vadd.f32 0.0, %v1058
      %v1060 = vpop.f32.mrf.mxu0
      %v1061 = vpop.f32.mrf.mxu0
      %v1062 = vadd.f32 0.0, %v1061
      %v1063 = vpop.f32.mrf.mxu0
      %1064 = vmatprep.mubr.bf16.mxu0 0
      %1065 = vmatmul.mubr.bf16.gmra.mxu0 %v963
      %v1066 = vpop.f32.mrf.mxu0
      %v1067 = vadd.f32 0.0, %v1066
      %v1068 = vpop.f32.mrf.mxu0
      %v1069 = vpop.f32.mrf.mxu0
      %v1070 = vadd.f32 0.0, %v1069
      %v1071 = vpop.f32.mrf.mxu0
      %1072 = vmatprep.mubr.bf16.mxu0 0
      %1073 = vmatmul.mubr.bf16.gmra.mxu0 %v966
      %v1074 = vpop.f32.mrf.mxu0
      %v1075 = vadd.f32 0.0, %v1074
      %v1076 = vpop.f32.mrf.mxu0
      %v1077 = vpop.f32.mrf.mxu0
      %v1078 = vadd.f32 0.0, %v1077
      %v1079 = vpop.f32.mrf.mxu0
      %1080 = vmatprep.mubr.bf16.mxu0 0
      %1081 = vmatmul.mubr.bf16.gmra.mxu0 %v969
      %v1082 = vpop.f32.mrf.mxu0
      %v1083 = vadd.f32 0.0, %v1082
      %v1084 = vpop.f32.mrf.mxu0
      %v1085 = vpop.f32.mrf.mxu0
      %v1086 = vadd.f32 0.0, %v1085
      %v1087 = vpop.f32.mrf.mxu0
      %1088 = vmatprep.mubr.bf16.mxu0 0
      %1089 = vmatmul.mubr.bf16.gmra.mxu0 %v972
      %v1090 = vpop.f32.mrf.mxu0
      %v1091 = vadd.f32 0.0, %v1090
      %v1092 = vpop.f32.mrf.mxu0
      %v1093 = vpop.f32.mrf.mxu0
      %v1094 = vadd.f32 0.0, %v1093
      %v1095 = vpop.f32.mrf.mxu0
      %1096 = vmatprep.mubr.bf16.mxu0 0
      %1097 = vmatmul.mubr.bf16.gmra.mxu0 %v975
      %v1098 = vpop.f32.mrf.mxu0
      %v1099 = vadd.f32 0.0, %v1098
      %v1100 = vpop.f32.mrf.mxu0
      %v1101 = vpop.f32.mrf.mxu0
      %v1102 = vadd.f32 0.0, %v1101
      %v1103 = vpop.f32.mrf.mxu0
      %1104 = vmatprep.mubr.bf16.mxu0 0
      %1105 = vmatmul.mubr.bf16.gmra.mxu0 %v978
      %v1106 = vpop.f32.mrf.mxu0
      %v1107 = vadd.f32 0.0, %v1106
      %v1108 = vpop.f32.mrf.mxu0
      %v1109 = vpop.f32.mrf.mxu0
      %v1110 = vadd.f32 0.0, %v1109
      %v1111 = vpop.f32.mrf.mxu0
      %1112 = vmatprep.mubr.bf16.mxu0 0
      %1113 = vmatmul.mubr.bf16.gmra.mxu0 %v981
      %v1114 = vpop.f32.mrf.mxu0
      %v1115 = vadd.f32 0.0, %v1114
      %v1116 = vpop.f32.mrf.mxu0
      %v1117 = vpop.f32.mrf.mxu0
      %v1118 = vadd.f32 0.0, %v1117
      %v1119 = vpop.f32.mrf.mxu0
      %1120 = vmatprep.mubr.bf16.mxu0 0
      %1121 = vmatmul.mubr.bf16.gmra.mxu0 %v984
      %v1122 = vpop.f32.mrf.mxu0
      %v1123 = vadd.f32 0.0, %v1122
      %v1124 = vpop.f32.mrf.mxu0
      %v1125 = vpop.f32.mrf.mxu0
      %v1126 = vadd.f32 0.0, %v1125
      %v1127 = vpop.f32.mrf.mxu0
      %1128 = vmatprep.mubr.bf16.mxu0 0
      %1129 = vmatmul.mubr.bf16.gmra.mxu0 %v987
      %v1130 = vpop.f32.mrf.mxu0
      %v1131 = vadd.f32 0.0, %v1130
      %v1132 = vpop.f32.mrf.mxu0
      %v1133 = vpop.f32.mrf.mxu0
      %v1134 = vadd.f32 0.0, %v1133
      %v1135 = vpop.f32.mrf.mxu0
      %1136 = vdwg.mxu0
      %v1137 = vadd.f32 %v875, %v1027
      %v1138 = vadd.f32 %v876, %v1030
      %v1139 = vadd.f32 %v877, %v1035
      %v1140 = vadd.f32 %v878, %v1038
      %v1141 = vadd.f32 %v879, %v1043
      %v1142 = vadd.f32 %v880, %v1046
      %v1143 = vadd.f32 %v881, %v1051
      %v1144 = vadd.f32 %v882, %v1054
      %v1145 = vadd.f32 %v883, %v1059
      %v1146 = vadd.f32 %v884, %v1062
      %v1147 = vadd.f32 %v885, %v1067
      %v1148 = vadd.f32 %v886, %v1070
      %v1149 = vadd.f32 %v887, %v1075
      %v1150 = vadd.f32 %v888, %v1078
      %v1151 = vadd.f32 %v889, %v1083
      %v1152 = vadd.f32 %v890, %v1086
      %v1153 = vadd.f32 %v891, %v1091
      %v1154 = vadd.f32 %v892, %v1094
      %v1155 = vadd.f32 %v893, %v1099
      %v1156 = vadd.f32 %v894, %v1102
      %v1157 = vadd.f32 %v895, %v1107
      %v1158 = vadd.f32 %v896, %v1110
      %v1159 = vadd.f32 %v897, %v1115
      %v1160 = vadd.f32 %v898, %v1118
      %v1161 = vadd.f32 %v899, %v1123
      %v1162 = vadd.f32 %v900, %v1126
      %v1163 = vadd.f32 %v901, %v1131
      %v1164 = vadd.f32 %v902, %v1134
      %v1165 = vld [vmem:[%s165 + $0x11] sm:$0xff]
      %v1166 = vld [vmem:[%s165 + $0x19] sm:$0xff]
      %v1167 = vld [vmem:[%s165 + $0x21] sm:$0xff]
      %v1168 = vld [vmem:[%s165 + $0x29] sm:$0xff]
      %v1169 = vld [vmem:[%s165 + $0x31] sm:$0xff]
      %v1170 = vld [vmem:[%s165 + $0x39] sm:$0xff]
      %v1171 = vld [vmem:[%s165 + $0x41] sm:$0xff]
      %v1172 = vld [vmem:[%s165 + $0x49] sm:$0xff]
      %v1173 = vld [vmem:[%s165 + $0x51] sm:$0xff]
      %v1174 = vld [vmem:[%s165 + $0x59] sm:$0xff]
      %v1175 = vld [vmem:[%s165 + $0x61] sm:$0xff]
      %v1176 = vld [vmem:[%s165 + $0x69] sm:$0xff]
      %v1177 = vld [vmem:[%s165 + $0x71] sm:$0xff]
      %v1178 = vld [vmem:[%s165 + $0x79] sm:$0xff]
      %v1179 = vld [vmem:[%s165 + $0x81] sm:$0xff]
      %v1180 = vld [vmem:[%s165 + $0x89] sm:$0xff]
      %v1181 = vld [vmem:[%s165 + $0x91] sm:$0xff]
      %v1182 = vld [vmem:[%s165 + $0x99] sm:$0xff]
      %v1183 = vld [vmem:[%s165 + $0xa1] sm:$0xff]
      %v1184 = vld [vmem:[%s165 + $0xa9] sm:$0xff]
      %v1185 = vld [vmem:[%s165 + $0xb1] sm:$0xff]
      %v1186 = vld [vmem:[%s165 + $0xb9] sm:$0xff]
      %v1187 = vld [vmem:[%s165 + $0xc1] sm:$0xff]
      %v1188 = vld [vmem:[%s165 + $0xc9] sm:$0xff]
      %v1189 = vld [vmem:[%s165 + $0xd1] sm:$0xff]
      %v1190 = vld [vmem:[%s165 + $0xd9] sm:$0xff]
      %v1191 = vld [vmem:[%s165 + $0xe1] sm:$0xff]
      %v1192 = vld [vmem:[%s165 + $0xe9] sm:$0xff]
      %v1193 = vpack.c.bf16 %v1166, %v1165
      %v1194 = vpack.c.bf16 %v1168, %v1167
      %v1195 = vpack.c.bf16 %v1170, %v1169
      %v1196 = vpack.c.bf16 %v1172, %v1171
      %v1197 = vpack.c.bf16 %v1174, %v1173
      %v1198 = vpack.c.bf16 %v1176, %v1175
      %v1199 = vpack.c.bf16 %v1178, %v1177
      %v1200 = vpack.c.bf16 %v1180, %v1179
      %v1201 = vpack.c.bf16 %v1182, %v1181
      %v1202 = vpack.c.bf16 %v1184, %v1183
      %v1203 = vpack.c.bf16 %v1186, %v1185
      %v1204 = vpack.c.bf16 %v1188, %v1187
      %v1205 = vpack.c.bf16 %v1190, %v1189
      %v1206 = vpack.c.bf16 %v1192, %v1191
      %s1207 = scalar_lea.vmem %s1, 8
      %v1208 = vld [vmem:[%s1207] sm:$0x3]
      %v1210 = vsel %vm259, %v1193, 0
      %v1213 = vsel %vm259, %v1194, 0
      %v1216 = vsel %vm259, %v1195, 0
      %v1219 = vsel %vm259, %v1196, 0
      %v1222 = vsel %vm259, %v1197, 0
      %v1225 = vsel %vm259, %v1198, 0
      %v1228 = vsel %vm259, %v1199, 0
      %v1231 = vsel %vm259, %v1200, 0
      %v1234 = vsel %vm259, %v1201, 0
      %v1237 = vsel %vm259, %v1202, 0
      %v1240 = vsel %vm259, %v1203, 0
      %v1243 = vsel %vm259, %v1204, 0
      %v1246 = vsel %vm259, %v1205, 0
      %v1249 = vsel %vm259, %v1206, 0
      %v1252 = vsel %vm302, %v1208, 0
      %1254 = vmatprep.subr.bf16.mxu0 0
      %1255 = vmatpush1.bf16.msra.mxu0 0
      %1256 = vmatprep.subr.bf16.mxu0 0
      %1257 = vmatpush1.bf16.msra.mxu0 0
      %1258 = vmatprep.subr.bf16.mxu0 0
      %1259 = vmatpush1.bf16.msra.mxu0 0
      %1260 = vmatprep.subr.bf16.mxu0 0
      %1261 = vmatpush1.bf16.msra.mxu0 0
      %1262 = vmatprep.subr.bf16.mxu0 0
      %1263 = vmatpush1.bf16.msra.mxu0 0
      %1264 = vmatprep.subr.bf16.mxu0 0
      %1265 = vmatpush1.bf16.msra.mxu0 0
      %1266 = vmatprep.subr.bf16.mxu0 0
      %1267 = vmatpush1.bf16.msra.mxu0 0
      %1268 = vmatprep.subr.bf16.mxu0 0
      %1269 = vmatpush1.bf16.msra.mxu0 %v1252
      %1270 = vmatprep.subr.bf16.mxu0 0
      %1271 = vmatpush2.bf16.msra.mxu0 0
      %1272 = vmatprep.subr.bf16.mxu0 0
      %1273 = vmatpush2.bf16.msra.mxu0 0
      %1274 = vmatprep.subr.bf16.mxu0 0
      %1275 = vmatpush2.bf16.msra.mxu0 0
      %1276 = vmatprep.subr.bf16.mxu0 0
      %1277 = vmatpush2.bf16.msra.mxu0 0
      %1278 = vmatprep.subr.bf16.mxu0 0
      %1279 = vmatpush2.bf16.msra.mxu0 0
      %1280 = vmatprep.subr.bf16.mxu0 0
      %1281 = vmatpush2.bf16.msra.mxu0 0
      %1282 = vmatprep.subr.bf16.mxu0 0
      %1283 = vmatpush2.bf16.msra.mxu0 0
      %1284 = vmatprep.subr.bf16.mxu0 0
      %1285 = vmatpush2.bf16.msra.mxu0 0
      %1286 = vmatprep.mubr.bf16.mxu0 0
      %1287 = vmatmul.mubr.bf16.gmra.mxu0 %v1210
      %v1288 = vpop.f32.mrf.mxu0
      %v1289 = vadd.f32 0.0, %v1288
      %v1290 = vpop.f32.mrf.mxu0
      %v1291 = vpop.f32.mrf.mxu0
      %v1292 = vadd.f32 0.0, %v1291
      %v1293 = vpop.f32.mrf.mxu0
      %1294 = vmatprep.mubr.bf16.mxu0 0
      %1295 = vmatmul.mubr.bf16.gmra.mxu0 %v1213
      %v1296 = vpop.f32.mrf.mxu0
      %v1297 = vadd.f32 0.0, %v1296
      %v1298 = vpop.f32.mrf.mxu0
      %v1299 = vpop.f32.mrf.mxu0
      %v1300 = vadd.f32 0.0, %v1299
      %v1301 = vpop.f32.mrf.mxu0
      %1302 = vmatprep.mubr.bf16.mxu0 0
      %1303 = vmatmul.mubr.bf16.gmra.mxu0 %v1216
      %v1304 = vpop.f32.mrf.mxu0
      %v1305 = vadd.f32 0.0, %v1304
      %v1306 = vpop.f32.mrf.mxu0
      %v1307 = vpop.f32.mrf.mxu0
      %v1308 = vadd.f32 0.0, %v1307
      %v1309 = vpop.f32.mrf.mxu0
      %1310 = vmatprep.mubr.bf16.mxu0 0
      %1311 = vmatmul.mubr.bf16.gmra.mxu0 %v1219
      %v1312 = vpop.f32.mrf.mxu0
      %v1313 = vadd.f32 0.0, %v1312
      %v1314 = vpop.f32.mrf.mxu0
      %v1315 = vpop.f32.mrf.mxu0
      %v1316 = vadd.f32 0.0, %v1315
      %v1317 = vpop.f32.mrf.mxu0
      %1318 = vmatprep.mubr.bf16.mxu0 0
      %1319 = vmatmul.mubr.bf16.gmra.mxu0 %v1222
      %v1320 = vpop.f32.mrf.mxu0
      %v1321 = vadd.f32 0.0, %v1320
      %v1322 = vpop.f32.mrf.mxu0
      %v1323 = vpop.f32.mrf.mxu0
      %v1324 = vadd.f32 0.0, %v1323
      %v1325 = vpop.f32.mrf.mxu0
      %1326 = vmatprep.mubr.bf16.mxu0 0
      %1327 = vmatmul.mubr.bf16.gmra.mxu0 %v1225
      %v1328 = vpop.f32.mrf.mxu0
      %v1329 = vadd.f32 0.0, %v1328
      %v1330 = vpop.f32.mrf.mxu0
      %v1331 = vpop.f32.mrf.mxu0
      %v1332 = vadd.f32 0.0, %v1331
      %v1333 = vpop.f32.mrf.mxu0
      %1334 = vmatprep.mubr.bf16.mxu0 0
      %1335 = vmatmul.mubr.bf16.gmra.mxu0 %v1228
      %v1336 = vpop.f32.mrf.mxu0
      %v1337 = vadd.f32 0.0, %v1336
      %v1338 = vpop.f32.mrf.mxu0
      %v1339 = vpop.f32.mrf.mxu0
      %v1340 = vadd.f32 0.0, %v1339
      %v1341 = vpop.f32.mrf.mxu0
      %1342 = vmatprep.mubr.bf16.mxu0 0
      %1343 = vmatmul.mubr.bf16.gmra.mxu0 %v1231
      %v1344 = vpop.f32.mrf.mxu0
      %v1345 = vadd.f32 0.0, %v1344
      %v1346 = vpop.f32.mrf.mxu0
      %v1347 = vpop.f32.mrf.mxu0
      %v1348 = vadd.f32 0.0, %v1347
      %v1349 = vpop.f32.mrf.mxu0
      %1350 = vmatprep.mubr.bf16.mxu0 0
      %1351 = vmatmul.mubr.bf16.gmra.mxu0 %v1234
      %v1352 = vpop.f32.mrf.mxu0
      %v1353 = vadd.f32 0.0, %v1352
      %v1354 = vpop.f32.mrf.mxu0
      %v1355 = vpop.f32.mrf.mxu0
      %v1356 = vadd.f32 0.0, %v1355
      %v1357 = vpop.f32.mrf.mxu0
      %1358 = vmatprep.mubr.bf16.mxu0 0
      %1359 = vmatmul.mubr.bf16.gmra.mxu0 %v1237
      %v1360 = vpop.f32.mrf.mxu0
      %v1361 = vadd.f32 0.0, %v1360
      %v1362 = vpop.f32.mrf.mxu0
      %v1363 = vpop.f32.mrf.mxu0
      %v1364 = vadd.f32 0.0, %v1363
      %v1365 = vpop.f32.mrf.mxu0
      %1366 = vmatprep.mubr.bf16.mxu0 0
      %1367 = vmatmul.mubr.bf16.gmra.mxu0 %v1240
      %v1368 = vpop.f32.mrf.mxu0
      %v1369 = vadd.f32 0.0, %v1368
      %v1370 = vpop.f32.mrf.mxu0
      %v1371 = vpop.f32.mrf.mxu0
      %v1372 = vadd.f32 0.0, %v1371
      %v1373 = vpop.f32.mrf.mxu0
      %1374 = vmatprep.mubr.bf16.mxu0 0
      %1375 = vmatmul.mubr.bf16.gmra.mxu0 %v1243
      %v1376 = vpop.f32.mrf.mxu0
      %v1377 = vadd.f32 0.0, %v1376
      %v1378 = vpop.f32.mrf.mxu0
      %v1379 = vpop.f32.mrf.mxu0
      %v1380 = vadd.f32 0.0, %v1379
      %v1381 = vpop.f32.mrf.mxu0
      %1382 = vmatprep.mubr.bf16.mxu0 0
      %1383 = vmatmul.mubr.bf16.gmra.mxu0 %v1246
      %v1384 = vpop.f32.mrf.mxu0
      %v1385 = vadd.f32 0.0, %v1384
      %v1386 = vpop.f32.mrf.mxu0
      %v1387 = vpop.f32.mrf.mxu0
      %v1388 = vadd.f32 0.0, %v1387
      %v1389 = vpop.f32.mrf.mxu0
      %1390 = vmatprep.mubr.bf16.mxu0 0
      %1391 = vmatmul.mubr.bf16.gmra.mxu0 %v1249
      %v1392 = vpop.f32.mrf.mxu0
      %v1393 = vadd.f32 0.0, %v1392
      %v1394 = vpop.f32.mrf.mxu0
      %v1395 = vpop.f32.mrf.mxu0
      %v1396 = vadd.f32 0.0, %v1395
      %v1397 = vpop.f32.mrf.mxu0
      %1398 = vdwg.mxu0
      %v1399 = vadd.f32 %v1137, %v1289
      %v1400 = vadd.f32 %v1138, %v1292
      %v1401 = vadd.f32 %v1139, %v1297
      %v1402 = vadd.f32 %v1140, %v1300
      %v1403 = vadd.f32 %v1141, %v1305
      %v1404 = vadd.f32 %v1142, %v1308
      %v1405 = vadd.f32 %v1143, %v1313
      %v1406 = vadd.f32 %v1144, %v1316
      %v1407 = vadd.f32 %v1145, %v1321
      %v1408 = vadd.f32 %v1146, %v1324
      %v1409 = vadd.f32 %v1147, %v1329
      %v1410 = vadd.f32 %v1148, %v1332
      %v1411 = vadd.f32 %v1149, %v1337
      %v1412 = vadd.f32 %v1150, %v1340
      %v1413 = vadd.f32 %v1151, %v1345
      %v1414 = vadd.f32 %v1152, %v1348
      %v1415 = vadd.f32 %v1153, %v1353
      %v1416 = vadd.f32 %v1154, %v1356
      %v1417 = vadd.f32 %v1155, %v1361
      %v1418 = vadd.f32 %v1156, %v1364
      %v1419 = vadd.f32 %v1157, %v1369
      %v1420 = vadd.f32 %v1158, %v1372
      %v1421 = vadd.f32 %v1159, %v1377
      %v1422 = vadd.f32 %v1160, %v1380
      %v1423 = vadd.f32 %v1161, %v1385
      %v1424 = vadd.f32 %v1162, %v1388
      %v1425 = vadd.f32 %v1163, %v1393
      %v1426 = vadd.f32 %v1164, %v1396
      %v1427 = vld [vmem:[%s165 + $0x12] sm:$0xff]
      %v1428 = vld [vmem:[%s165 + $0x1a] sm:$0xff]
      %v1429 = vld [vmem:[%s165 + $0x22] sm:$0xff]
      %v1430 = vld [vmem:[%s165 + $0x2a] sm:$0xff]
      %v1431 = vld [vmem:[%s165 + $0x32] sm:$0xff]
      %v1432 = vld [vmem:[%s165 + $0x3a] sm:$0xff]
      %v1433 = vld [vmem:[%s165 + $0x42] sm:$0xff]
      %v1434 = vld [vmem:[%s165 + $0x4a] sm:$0xff]
      %v1435 = vld [vmem:[%s165 + $0x52] sm:$0xff]
      %v1436 = vld [vmem:[%s165 + $0x5a] sm:$0xff]
      %v1437 = vld [vmem:[%s165 + $0x62] sm:$0xff]
      %v1438 = vld [vmem:[%s165 + $0x6a] sm:$0xff]
      %v1439 = vld [vmem:[%s165 + $0x72] sm:$0xff]
      %v1440 = vld [vmem:[%s165 + $0x7a] sm:$0xff]
      %v1441 = vld [vmem:[%s165 + $0x82] sm:$0xff]
      %v1442 = vld [vmem:[%s165 + $0x8a] sm:$0xff]
      %v1443 = vld [vmem:[%s165 + $0x92] sm:$0xff]
      %v1444 = vld [vmem:[%s165 + $0x9a] sm:$0xff]
      %v1445 = vld [vmem:[%s165 + $0xa2] sm:$0xff]
      %v1446 = vld [vmem:[%s165 + $0xaa] sm:$0xff]
      %v1447 = vld [vmem:[%s165 + $0xb2] sm:$0xff]
      %v1448 = vld [vmem:[%s165 + $0xba] sm:$0xff]
      %v1449 = vld [vmem:[%s165 + $0xc2] sm:$0xff]
      %v1450 = vld [vmem:[%s165 + $0xca] sm:$0xff]
      %v1451 = vld [vmem:[%s165 + $0xd2] sm:$0xff]
      %v1452 = vld [vmem:[%s165 + $0xda] sm:$0xff]
      %v1453 = vld [vmem:[%s165 + $0xe2] sm:$0xff]
      %v1454 = vld [vmem:[%s165 + $0xea] sm:$0xff]
      %v1455 = vpack.c.bf16 %v1428, %v1427
      %v1456 = vpack.c.bf16 %v1430, %v1429
      %v1457 = vpack.c.bf16 %v1432, %v1431
      %v1458 = vpack.c.bf16 %v1434, %v1433
      %v1459 = vpack.c.bf16 %v1436, %v1435
      %v1460 = vpack.c.bf16 %v1438, %v1437
      %v1461 = vpack.c.bf16 %v1440, %v1439
      %v1462 = vpack.c.bf16 %v1442, %v1441
      %v1463 = vpack.c.bf16 %v1444, %v1443
      %v1464 = vpack.c.bf16 %v1446, %v1445
      %v1465 = vpack.c.bf16 %v1448, %v1447
      %v1466 = vpack.c.bf16 %v1450, %v1449
      %v1467 = vpack.c.bf16 %v1452, %v1451
      %v1468 = vpack.c.bf16 %v1454, %v1453
      %s1469 = scalar_lea.vmem %s1, 10
      %v1470 = vld [vmem:[%s1469] sm:$0x3]
      %v1472 = vsel %vm259, %v1455, 0
      %v1475 = vsel %vm259, %v1456, 0
      %v1478 = vsel %vm259, %v1457, 0
      %v1481 = vsel %vm259, %v1458, 0
      %v1484 = vsel %vm259, %v1459, 0
      %v1487 = vsel %vm259, %v1460, 0
      %v1490 = vsel %vm259, %v1461, 0
      %v1493 = vsel %vm259, %v1462, 0
      %v1496 = vsel %vm259, %v1463, 0
      %v1499 = vsel %vm259, %v1464, 0
      %v1502 = vsel %vm259, %v1465, 0
      %v1505 = vsel %vm259, %v1466, 0
      %v1508 = vsel %vm259, %v1467, 0
      %v1511 = vsel %vm259, %v1468, 0
      %v1514 = vsel %vm302, %v1470, 0
      %1516 = vmatprep.subr.bf16.mxu0 0
      %1517 = vmatpush1.bf16.msra.mxu0 0
      %1518 = vmatprep.subr.bf16.mxu0 0
      %1519 = vmatpush1.bf16.msra.mxu0 0
      %1520 = vmatprep.subr.bf16.mxu0 0
      %1521 = vmatpush1.bf16.msra.mxu0 0
      %1522 = vmatprep.subr.bf16.mxu0 0
      %1523 = vmatpush1.bf16.msra.mxu0 0
      %1524 = vmatprep.subr.bf16.mxu0 0
      %1525 = vmatpush1.bf16.msra.mxu0 0
      %1526 = vmatprep.subr.bf16.mxu0 0
      %1527 = vmatpush1.bf16.msra.mxu0 0
      %1528 = vmatprep.subr.bf16.mxu0 0
      %1529 = vmatpush1.bf16.msra.mxu0 0
      %1530 = vmatprep.subr.bf16.mxu0 0
      %1531 = vmatpush1.bf16.msra.mxu0 %v1514
      %1532 = vmatprep.subr.bf16.mxu0 0
      %1533 = vmatpush2.bf16.msra.mxu0 0
      %1534 = vmatprep.subr.bf16.mxu0 0
      %1535 = vmatpush2.bf16.msra.mxu0 0
      %1536 = vmatprep.subr.bf16.mxu0 0
      %1537 = vmatpush2.bf16.msra.mxu0 0
      %1538 = vmatprep.subr.bf16.mxu0 0
      %1539 = vmatpush2.bf16.msra.mxu0 0
      %1540 = vmatprep.subr.bf16.mxu0 0
      %1541 = vmatpush2.bf16.msra.mxu0 0
      %1542 = vmatprep.subr.bf16.mxu0 0
      %1543 = vmatpush2.bf16.msra.mxu0 0
      %1544 = vmatprep.subr.bf16.mxu0 0
      %1545 = vmatpush2.bf16.msra.mxu0 0
      %1546 = vmatprep.subr.bf16.mxu0 0
      %1547 = vmatpush2.bf16.msra.mxu0 0
      %1548 = vmatprep.mubr.bf16.mxu0 0
      %1549 = vmatmul.mubr.bf16.gmra.mxu0 %v1472
      %v1550 = vpop.f32.mrf.mxu0
      %v1551 = vadd.f32 0.0, %v1550
      %v1552 = vpop.f32.mrf.mxu0
      %v1553 = vpop.f32.mrf.mxu0
      %v1554 = vadd.f32 0.0, %v1553
      %v1555 = vpop.f32.mrf.mxu0
      %1556 = vmatprep.mubr.bf16.mxu0 0
      %1557 = vmatmul.mubr.bf16.gmra.mxu0 %v1475
      %v1558 = vpop.f32.mrf.mxu0
      %v1559 = vadd.f32 0.0, %v1558
      %v1560 = vpop.f32.mrf.mxu0
      %v1561 = vpop.f32.mrf.mxu0
      %v1562 = vadd.f32 0.0, %v1561
      %v1563 = vpop.f32.mrf.mxu0
      %1564 = vmatprep.mubr.bf16.mxu0 0
      %1565 = vmatmul.mubr.bf16.gmra.mxu0 %v1478
      %v1566 = vpop.f32.mrf.mxu0
      %v1567 = vadd.f32 0.0, %v1566
      %v1568 = vpop.f32.mrf.mxu0
      %v1569 = vpop.f32.mrf.mxu0
      %v1570 = vadd.f32 0.0, %v1569
      %v1571 = vpop.f32.mrf.mxu0
      %1572 = vmatprep.mubr.bf16.mxu0 0
      %1573 = vmatmul.mubr.bf16.gmra.mxu0 %v1481
      %v1574 = vpop.f32.mrf.mxu0
      %v1575 = vadd.f32 0.0, %v1574
      %v1576 = vpop.f32.mrf.mxu0
      %v1577 = vpop.f32.mrf.mxu0
      %v1578 = vadd.f32 0.0, %v1577
      %v1579 = vpop.f32.mrf.mxu0
      %1580 = vmatprep.mubr.bf16.mxu0 0
      %1581 = vmatmul.mubr.bf16.gmra.mxu0 %v1484
      %v1582 = vpop.f32.mrf.mxu0
      %v1583 = vadd.f32 0.0, %v1582
      %v1584 = vpop.f32.mrf.mxu0
      %v1585 = vpop.f32.mrf.mxu0
      %v1586 = vadd.f32 0.0, %v1585
      %v1587 = vpop.f32.mrf.mxu0
      %1588 = vmatprep.mubr.bf16.mxu0 0
      %1589 = vmatmul.mubr.bf16.gmra.mxu0 %v1487
      %v1590 = vpop.f32.mrf.mxu0
      %v1591 = vadd.f32 0.0, %v1590
      %v1592 = vpop.f32.mrf.mxu0
      %v1593 = vpop.f32.mrf.mxu0
      %v1594 = vadd.f32 0.0, %v1593
      %v1595 = vpop.f32.mrf.mxu0
      %1596 = vmatprep.mubr.bf16.mxu0 0
      %1597 = vmatmul.mubr.bf16.gmra.mxu0 %v1490
      %v1598 = vpop.f32.mrf.mxu0
      %v1599 = vadd.f32 0.0, %v1598
      %v1600 = vpop.f32.mrf.mxu0
      %v1601 = vpop.f32.mrf.mxu0
      %v1602 = vadd.f32 0.0, %v1601
      %v1603 = vpop.f32.mrf.mxu0
      %1604 = vmatprep.mubr.bf16.mxu0 0
      %1605 = vmatmul.mubr.bf16.gmra.mxu0 %v1493
      %v1606 = vpop.f32.mrf.mxu0
      %v1607 = vadd.f32 0.0, %v1606
      %v1608 = vpop.f32.mrf.mxu0
      %v1609 = vpop.f32.mrf.mxu0
      %v1610 = vadd.f32 0.0, %v1609
      %v1611 = vpop.f32.mrf.mxu0
      %1612 = vmatprep.mubr.bf16.mxu0 0
      %1613 = vmatmul.mubr.bf16.gmra.mxu0 %v1496
      %v1614 = vpop.f32.mrf.mxu0
      %v1615 = vadd.f32 0.0, %v1614
      %v1616 = vpop.f32.mrf.mxu0
      %v1617 = vpop.f32.mrf.mxu0
      %v1618 = vadd.f32 0.0, %v1617
      %v1619 = vpop.f32.mrf.mxu0
      %1620 = vmatprep.mubr.bf16.mxu0 0
      %1621 = vmatmul.mubr.bf16.gmra.mxu0 %v1499
      %v1622 = vpop.f32.mrf.mxu0
      %v1623 = vadd.f32 0.0, %v1622
      %v1624 = vpop.f32.mrf.mxu0
      %v1625 = vpop.f32.mrf.mxu0
      %v1626 = vadd.f32 0.0, %v1625
      %v1627 = vpop.f32.mrf.mxu0
      %1628 = vmatprep.mubr.bf16.mxu0 0
      %1629 = vmatmul.mubr.bf16.gmra.mxu0 %v1502
      %v1630 = vpop.f32.mrf.mxu0
      %v1631 = vadd.f32 0.0, %v1630
      %v1632 = vpop.f32.mrf.mxu0
      %v1633 = vpop.f32.mrf.mxu0
      %v1634 = vadd.f32 0.0, %v1633
      %v1635 = vpop.f32.mrf.mxu0
      %1636 = vmatprep.mubr.bf16.mxu0 0
      %1637 = vmatmul.mubr.bf16.gmra.mxu0 %v1505
      %v1638 = vpop.f32.mrf.mxu0
      %v1639 = vadd.f32 0.0, %v1638
      %v1640 = vpop.f32.mrf.mxu0
      %v1641 = vpop.f32.mrf.mxu0
      %v1642 = vadd.f32 0.0, %v1641
      %v1643 = vpop.f32.mrf.mxu0
      %1644 = vmatprep.mubr.bf16.mxu0 0
      %1645 = vmatmul.mubr.bf16.gmra.mxu0 %v1508
      %v1646 = vpop.f32.mrf.mxu0
      %v1647 = vadd.f32 0.0, %v1646
      %v1648 = vpop.f32.mrf.mxu0
      %v1649 = vpop.f32.mrf.mxu0
      %v1650 = vadd.f32 0.0, %v1649
      %v1651 = vpop.f32.mrf.mxu0
      %1652 = vmatprep.mubr.bf16.mxu0 0
      %1653 = vmatmul.mubr.bf16.gmra.mxu0 %v1511
      %v1654 = vpop.f32.mrf.mxu0
      %v1655 = vadd.f32 0.0, %v1654
      %v1656 = vpop.f32.mrf.mxu0
      %v1657 = vpop.f32.mrf.mxu0
      %v1658 = vadd.f32 0.0, %v1657
      %v1659 = vpop.f32.mrf.mxu0
      %1660 = vdwg.mxu0
      %v1661 = vadd.f32 %v1399, %v1551
      %v1662 = vadd.f32 %v1400, %v1554
      %v1663 = vadd.f32 %v1401, %v1559
      %v1664 = vadd.f32 %v1402, %v1562
      %v1665 = vadd.f32 %v1403, %v1567
      %v1666 = vadd.f32 %v1404, %v1570
      %v1667 = vadd.f32 %v1405, %v1575
      %v1668 = vadd.f32 %v1406, %v1578
      %v1669 = vadd.f32 %v1407, %v1583
      %v1670 = vadd.f32 %v1408, %v1586
      %v1671 = vadd.f32 %v1409, %v1591
      %v1672 = vadd.f32 %v1410, %v1594
      %v1673 = vadd.f32 %v1411, %v1599
      %v1674 = vadd.f32 %v1412, %v1602
      %v1675 = vadd.f32 %v1413, %v1607
      %v1676 = vadd.f32 %v1414, %v1610
      %v1677 = vadd.f32 %v1415, %v1615
      %v1678 = vadd.f32 %v1416, %v1618
      %v1679 = vadd.f32 %v1417, %v1623
      %v1680 = vadd.f32 %v1418, %v1626
      %v1681 = vadd.f32 %v1419, %v1631
      %v1682 = vadd.f32 %v1420, %v1634
      %v1683 = vadd.f32 %v1421, %v1639
      %v1684 = vadd.f32 %v1422, %v1642
      %v1685 = vadd.f32 %v1423, %v1647
      %v1686 = vadd.f32 %v1424, %v1650
      %v1687 = vadd.f32 %v1425, %v1655
      %v1688 = vadd.f32 %v1426, %v1658
      %v1689 = vld [vmem:[%s165 + $0x20] sm:$0xff]
      %v1690 = vld [vmem:[%s165 + $0x28] sm:$0xff]
      %v1691 = vld [vmem:[%s165 + $0x30] sm:$0xff]
      %v1692 = vld [vmem:[%s165 + $0x38] sm:$0xff]
      %v1693 = vld [vmem:[%s165 + $0x40] sm:$0xff]
      %v1694 = vld [vmem:[%s165 + $0x48] sm:$0xff]
      %v1695 = vld [vmem:[%s165 + $0x50] sm:$0xff]
      %v1696 = vld [vmem:[%s165 + $0x58] sm:$0xff]
      %v1697 = vld [vmem:[%s165 + $0x60] sm:$0xff]
      %v1698 = vld [vmem:[%s165 + $0x68] sm:$0xff]
      %v1699 = vld [vmem:[%s165 + $0x70] sm:$0xff]
      %v1700 = vld [vmem:[%s165 + $0x78] sm:$0xff]
      %v1701 = vld [vmem:[%s165 + $0x80] sm:$0xff]
      %v1702 = vld [vmem:[%s165 + $0x88] sm:$0xff]
      %v1703 = vld [vmem:[%s165 + $0x90] sm:$0xff]
      %v1704 = vld [vmem:[%s165 + $0x98] sm:$0xff]
      %v1705 = vld [vmem:[%s165 + $0xa0] sm:$0xff]
      %v1706 = vld [vmem:[%s165 + $0xa8] sm:$0xff]
      %v1707 = vld [vmem:[%s165 + $0xb0] sm:$0xff]
      %v1708 = vld [vmem:[%s165 + $0xb8] sm:$0xff]
      %v1709 = vld [vmem:[%s165 + $0xc0] sm:$0xff]
      %v1710 = vld [vmem:[%s165 + $0xc8] sm:$0xff]
      %v1711 = vld [vmem:[%s165 + $0xd0] sm:$0xff]
      %v1712 = vld [vmem:[%s165 + $0xd8] sm:$0xff]
      %v1713 = vld [vmem:[%s165 + $0xe0] sm:$0xff]
      %v1714 = vld [vmem:[%s165 + $0xe8] sm:$0xff]
      %v1715 = vld [vmem:[%s165 + $0xf0] sm:$0xff]
      %v1716 = vld [vmem:[%s165 + $0xf8] sm:$0xff]
      %v1717 = vpack.c.bf16 %v1690, %v1689
      %v1718 = vpack.c.bf16 %v1692, %v1691
      %v1719 = vpack.c.bf16 %v1694, %v1693
      %v1720 = vpack.c.bf16 %v1696, %v1695
      %v1721 = vpack.c.bf16 %v1698, %v1697
      %v1722 = vpack.c.bf16 %v1700, %v1699
      %v1723 = vpack.c.bf16 %v1702, %v1701
      %v1724 = vpack.c.bf16 %v1704, %v1703
      %v1725 = vpack.c.bf16 %v1706, %v1705
      %v1726 = vpack.c.bf16 %v1708, %v1707
      %v1727 = vpack.c.bf16 %v1710, %v1709
      %v1728 = vpack.c.bf16 %v1712, %v1711
      %v1729 = vpack.c.bf16 %v1714, %v1713
      %v1730 = vpack.c.bf16 %v1716, %v1715
      %s1731 = scalar_lea.vmem %s1, 12
      %v1732 = vld [vmem:[%s1731] sm:$0x3]
      %v1734 = vsel %vm259, %v1717, 0
      %v1737 = vsel %vm259, %v1718, 0
      %v1740 = vsel %vm259, %v1719, 0
      %v1743 = vsel %vm259, %v1720, 0
      %v1746 = vsel %vm259, %v1721, 0
      %v1749 = vsel %vm259, %v1722, 0
      %v1752 = vsel %vm259, %v1723, 0
      %v1755 = vsel %vm259, %v1724, 0
      %v1758 = vsel %vm259, %v1725, 0
      %v1761 = vsel %vm259, %v1726, 0
      %v1764 = vsel %vm259, %v1727, 0
      %v1767 = vsel %vm259, %v1728, 0
      %v1770 = vsel %vm259, %v1729, 0
      %v1773 = vsel %vm259, %v1730, 0
      %v1776 = vsel %vm302, %v1732, 0
      %1778 = vmatprep.subr.bf16.mxu0 0
      %1779 = vmatpush1.bf16.msra.mxu0 0
      %1780 = vmatprep.subr.bf16.mxu0 0
      %1781 = vmatpush1.bf16.msra.mxu0 0
      %1782 = vmatprep.subr.bf16.mxu0 0
      %1783 = vmatpush1.bf16.msra.mxu0 0
      %1784 = vmatprep.subr.bf16.mxu0 0
      %1785 = vmatpush1.bf16.msra.mxu0 0
      %1786 = vmatprep.subr.bf16.mxu0 0
      %1787 = vmatpush1.bf16.msra.mxu0 0
      %1788 = vmatprep.subr.bf16.mxu0 0
      %1789 = vmatpush1.bf16.msra.mxu0 0
      %1790 = vmatprep.subr.bf16.mxu0 0
      %1791 = vmatpush1.bf16.msra.mxu0 0
      %1792 = vmatprep.subr.bf16.mxu0 0
      %1793 = vmatpush1.bf16.msra.mxu0 %v1776
      %1794 = vmatprep.subr.bf16.mxu0 0
      %1795 = vmatpush2.bf16.msra.mxu0 0
      %1796 = vmatprep.subr.bf16.mxu0 0
      %1797 = vmatpush2.bf16.msra.mxu0 0
      %1798 = vmatprep.subr.bf16.mxu0 0
      %1799 = vmatpush2.bf16.msra.mxu0 0
      %1800 = vmatprep.subr.bf16.mxu0 0
      %1801 = vmatpush2.bf16.msra.mxu0 0
      %1802 = vmatprep.subr.bf16.mxu0 0
      %1803 = vmatpush2.bf16.msra.mxu0 0
      %1804 = vmatprep.subr.bf16.mxu0 0
      %1805 = vmatpush2.bf16.msra.mxu0 0
      %1806 = vmatprep.subr.bf16.mxu0 0
      %1807 = vmatpush2.bf16.msra.mxu0 0
      %1808 = vmatprep.subr.bf16.mxu0 0
      %1809 = vmatpush2.bf16.msra.mxu0 0
      %1810 = vmatprep.mubr.bf16.mxu0 0
      %1811 = vmatmul.mubr.bf16.gmra.mxu0 %v1734
      %v1812 = vpop.f32.mrf.mxu0
      %v1813 = vadd.f32 0.0, %v1812
      %v1814 = vpop.f32.mrf.mxu0
      %v1815 = vpop.f32.mrf.mxu0
      %v1816 = vadd.f32 0.0, %v1815
      %v1817 = vpop.f32.mrf.mxu0
      %1818 = vmatprep.mubr.bf16.mxu0 0
      %1819 = vmatmul.mubr.bf16.gmra.mxu0 %v1737
      %v1820 = vpop.f32.mrf.mxu0
      %v1821 = vadd.f32 0.0, %v1820
      %v1822 = vpop.f32.mrf.mxu0
      %v1823 = vpop.f32.mrf.mxu0
      %v1824 = vadd.f32 0.0, %v1823
      %v1825 = vpop.f32.mrf.mxu0
      %1826 = vmatprep.mubr.bf16.mxu0 0
      %1827 = vmatmul.mubr.bf16.gmra.mxu0 %v1740
      %v1828 = vpop.f32.mrf.mxu0
      %v1829 = vadd.f32 0.0, %v1828
      %v1830 = vpop.f32.mrf.mxu0
      %v1831 = vpop.f32.mrf.mxu0
      %v1832 = vadd.f32 0.0, %v1831
      %v1833 = vpop.f32.mrf.mxu0
      %1834 = vmatprep.mubr.bf16.mxu0 0
      %1835 = vmatmul.mubr.bf16.gmra.mxu0 %v1743
      %v1836 = vpop.f32.mrf.mxu0
      %v1837 = vadd.f32 0.0, %v1836
      %v1838 = vpop.f32.mrf.mxu0
      %v1839 = vpop.f32.mrf.mxu0
      %v1840 = vadd.f32 0.0, %v1839
      %v1841 = vpop.f32.mrf.mxu0
      %1842 = vmatprep.mubr.bf16.mxu0 0
      %1843 = vmatmul.mubr.bf16.gmra.mxu0 %v1746
      %v1844 = vpop.f32.mrf.mxu0
      %v1845 = vadd.f32 0.0, %v1844
      %v1846 = vpop.f32.mrf.mxu0
      %v1847 = vpop.f32.mrf.mxu0
      %v1848 = vadd.f32 0.0, %v1847
      %v1849 = vpop.f32.mrf.mxu0
      %1850 = vmatprep.mubr.bf16.mxu0 0
      %1851 = vmatmul.mubr.bf16.gmra.mxu0 %v1749
      %v1852 = vpop.f32.mrf.mxu0
      %v1853 = vadd.f32 0.0, %v1852
      %v1854 = vpop.f32.mrf.mxu0
      %v1855 = vpop.f32.mrf.mxu0
      %v1856 = vadd.f32 0.0, %v1855
      %v1857 = vpop.f32.mrf.mxu0
      %1858 = vmatprep.mubr.bf16.mxu0 0
      %1859 = vmatmul.mubr.bf16.gmra.mxu0 %v1752
      %v1860 = vpop.f32.mrf.mxu0
      %v1861 = vadd.f32 0.0, %v1860
      %v1862 = vpop.f32.mrf.mxu0
      %v1863 = vpop.f32.mrf.mxu0
      %v1864 = vadd.f32 0.0, %v1863
      %v1865 = vpop.f32.mrf.mxu0
      %1866 = vmatprep.mubr.bf16.mxu0 0
      %1867 = vmatmul.mubr.bf16.gmra.mxu0 %v1755
      %v1868 = vpop.f32.mrf.mxu0
      %v1869 = vadd.f32 0.0, %v1868
      %v1870 = vpop.f32.mrf.mxu0
      %v1871 = vpop.f32.mrf.mxu0
      %v1872 = vadd.f32 0.0, %v1871
      %v1873 = vpop.f32.mrf.mxu0
      %1874 = vmatprep.mubr.bf16.mxu0 0
      %1875 = vmatmul.mubr.bf16.gmra.mxu0 %v1758
      %v1876 = vpop.f32.mrf.mxu0
      %v1877 = vadd.f32 0.0, %v1876
      %v1878 = vpop.f32.mrf.mxu0
      %v1879 = vpop.f32.mrf.mxu0
      %v1880 = vadd.f32 0.0, %v1879
      %v1881 = vpop.f32.mrf.mxu0
      %1882 = vmatprep.mubr.bf16.mxu0 0
      %1883 = vmatmul.mubr.bf16.gmra.mxu0 %v1761
      %v1884 = vpop.f32.mrf.mxu0
      %v1885 = vadd.f32 0.0, %v1884
      %v1886 = vpop.f32.mrf.mxu0
      %v1887 = vpop.f32.mrf.mxu0
      %v1888 = vadd.f32 0.0, %v1887
      %v1889 = vpop.f32.mrf.mxu0
      %1890 = vmatprep.mubr.bf16.mxu0 0
      %1891 = vmatmul.mubr.bf16.gmra.mxu0 %v1764
      %v1892 = vpop.f32.mrf.mxu0
      %v1893 = vadd.f32 0.0, %v1892
      %v1894 = vpop.f32.mrf.mxu0
      %v1895 = vpop.f32.mrf.mxu0
      %v1896 = vadd.f32 0.0, %v1895
      %v1897 = vpop.f32.mrf.mxu0
      %1898 = vmatprep.mubr.bf16.mxu0 0
      %1899 = vmatmul.mubr.bf16.gmra.mxu0 %v1767
      %v1900 = vpop.f32.mrf.mxu0
      %v1901 = vadd.f32 0.0, %v1900
      %v1902 = vpop.f32.mrf.mxu0
      %v1903 = vpop.f32.mrf.mxu0
      %v1904 = vadd.f32 0.0, %v1903
      %v1905 = vpop.f32.mrf.mxu0
      %1906 = vmatprep.mubr.bf16.mxu0 0
      %1907 = vmatmul.mubr.bf16.gmra.mxu0 %v1770
      %v1908 = vpop.f32.mrf.mxu0
      %v1909 = vadd.f32 0.0, %v1908
      %v1910 = vpop.f32.mrf.mxu0
      %v1911 = vpop.f32.mrf.mxu0
      %v1912 = vadd.f32 0.0, %v1911
      %v1913 = vpop.f32.mrf.mxu0
      %1914 = vmatprep.mubr.bf16.mxu0 0
      %1915 = vmatmul.mubr.bf16.gmra.mxu0 %v1773
      %v1916 = vpop.f32.mrf.mxu0
      %v1917 = vadd.f32 0.0, %v1916
      %v1918 = vpop.f32.mrf.mxu0
      %v1919 = vpop.f32.mrf.mxu0
      %v1920 = vadd.f32 0.0, %v1919
      %v1921 = vpop.f32.mrf.mxu0
      %1922 = vdwg.mxu0
      %v1923 = vadd.f32 %v1661, %v1813
      %v1924 = vadd.f32 %v1662, %v1816
      %v1925 = vadd.f32 %v1663, %v1821
      %v1926 = vadd.f32 %v1664, %v1824
      %v1927 = vadd.f32 %v1665, %v1829
      %v1928 = vadd.f32 %v1666, %v1832
      %v1929 = vadd.f32 %v1667, %v1837
      %v1930 = vadd.f32 %v1668, %v1840
      %v1931 = vadd.f32 %v1669, %v1845
      %v1932 = vadd.f32 %v1670, %v1848
      %v1933 = vadd.f32 %v1671, %v1853
      %v1934 = vadd.f32 %v1672, %v1856
      %v1935 = vadd.f32 %v1673, %v1861
      %v1936 = vadd.f32 %v1674, %v1864
      %v1937 = vadd.f32 %v1675, %v1869
      %v1938 = vadd.f32 %v1676, %v1872
      %v1939 = vadd.f32 %v1677, %v1877
      %v1940 = vadd.f32 %v1678, %v1880
      %v1941 = vadd.f32 %v1679, %v1885
      %v1942 = vadd.f32 %v1680, %v1888
      %v1943 = vadd.f32 %v1681, %v1893
      %v1944 = vadd.f32 %v1682, %v1896
      %v1945 = vadd.f32 %v1683, %v1901
      %v1946 = vadd.f32 %v1684, %v1904
      %v1947 = vadd.f32 %v1685, %v1909
      %v1948 = vadd.f32 %v1686, %v1912
      %v1949 = vadd.f32 %v1687, %v1917
      %v1950 = vadd.f32 %v1688, %v1920
      %v1951 = vld [vmem:[%s165 + $0x21] sm:$0xff]
      %v1952 = vld [vmem:[%s165 + $0x29] sm:$0xff]
      %v1953 = vld [vmem:[%s165 + $0x31] sm:$0xff]
      %v1954 = vld [vmem:[%s165 + $0x39] sm:$0xff]
      %v1955 = vld [vmem:[%s165 + $0x41] sm:$0xff]
      %v1956 = vld [vmem:[%s165 + $0x49] sm:$0xff]
      %v1957 = vld [vmem:[%s165 + $0x51] sm:$0xff]
      %v1958 = vld [vmem:[%s165 + $0x59] sm:$0xff]
      %v1959 = vld [vmem:[%s165 + $0x61] sm:$0xff]
      %v1960 = vld [vmem:[%s165 + $0x69] sm:$0xff]
      %v1961 = vld [vmem:[%s165 + $0x71] sm:$0xff]
      %v1962 = vld [vmem:[%s165 + $0x79] sm:$0xff]
      %v1963 = vld [vmem:[%s165 + $0x81] sm:$0xff]
      %v1964 = vld [vmem:[%s165 + $0x89] sm:$0xff]
      %v1965 = vld [vmem:[%s165 + $0x91] sm:$0xff]
      %v1966 = vld [vmem:[%s165 + $0x99] sm:$0xff]
      %v1967 = vld [vmem:[%s165 + $0xa1] sm:$0xff]
      %v1968 = vld [vmem:[%s165 + $0xa9] sm:$0xff]
      %v1969 = vld [vmem:[%s165 + $0xb1] sm:$0xff]
      %v1970 = vld [vmem:[%s165 + $0xb9] sm:$0xff]
      %v1971 = vld [vmem:[%s165 + $0xc1] sm:$0xff]
      %v1972 = vld [vmem:[%s165 + $0xc9] sm:$0xff]
      %v1973 = vld [vmem:[%s165 + $0xd1] sm:$0xff]
      %v1974 = vld [vmem:[%s165 + $0xd9] sm:$0xff]
      %v1975 = vld [vmem:[%s165 + $0xe1] sm:$0xff]
      %v1976 = vld [vmem:[%s165 + $0xe9] sm:$0xff]
      %v1977 = vld [vmem:[%s165 + $0xf1] sm:$0xff]
      %v1978 = vld [vmem:[%s165 + $0xf9] sm:$0xff]
      %v1979 = vpack.c.bf16 %v1952, %v1951
      %v1980 = vpack.c.bf16 %v1954, %v1953
      %v1981 = vpack.c.bf16 %v1956, %v1955
      %v1982 = vpack.c.bf16 %v1958, %v1957
      %v1983 = vpack.c.bf16 %v1960, %v1959
      %v1984 = vpack.c.bf16 %v1962, %v1961
      %v1985 = vpack.c.bf16 %v1964, %v1963
      %v1986 = vpack.c.bf16 %v1966, %v1965
      %v1987 = vpack.c.bf16 %v1968, %v1967
      %v1988 = vpack.c.bf16 %v1970, %v1969
      %v1989 = vpack.c.bf16 %v1972, %v1971
      %v1990 = vpack.c.bf16 %v1974, %v1973
      %v1991 = vpack.c.bf16 %v1976, %v1975
      %v1992 = vpack.c.bf16 %v1978, %v1977
      %s1993 = scalar_lea.vmem %s1, 14
      %v1994 = vld [vmem:[%s1993] sm:$0x3]
      %v1996 = vsel %vm259, %v1979, 0
      %v1999 = vsel %vm259, %v1980, 0
      %v2002 = vsel %vm259, %v1981, 0
      %v2005 = vsel %vm259, %v1982, 0
      %v2008 = vsel %vm259, %v1983, 0
      %v2011 = vsel %vm259, %v1984, 0
      %v2014 = vsel %vm259, %v1985, 0
      %v2017 = vsel %vm259, %v1986, 0
      %v2020 = vsel %vm259, %v1987, 0
      %v2023 = vsel %vm259, %v1988, 0
      %v2026 = vsel %vm259, %v1989, 0
      %v2029 = vsel %vm259, %v1990, 0
      %v2032 = vsel %vm259, %v1991, 0
      %v2035 = vsel %vm259, %v1992, 0
      %v2038 = vsel %vm302, %v1994, 0
      %2040 = vmatprep.subr.bf16.mxu0 0
      %2041 = vmatpush1.bf16.msra.mxu0 0
      %2042 = vmatprep.subr.bf16.mxu0 0
      %2043 = vmatpush1.bf16.msra.mxu0 0
      %2044 = vmatprep.subr.bf16.mxu0 0
      %2045 = vmatpush1.bf16.msra.mxu0 0
      %2046 = vmatprep.subr.bf16.mxu0 0
      %2047 = vmatpush1.bf16.msra.mxu0 0
      %2048 = vmatprep.subr.bf16.mxu0 0
      %2049 = vmatpush1.bf16.msra.mxu0 0
      %2050 = vmatprep.subr.bf16.mxu0 0
      %2051 = vmatpush1.bf16.msra.mxu0 0
      %2052 = vmatprep.subr.bf16.mxu0 0
      %2053 = vmatpush1.bf16.msra.mxu0 0
      %2054 = vmatprep.subr.bf16.mxu0 0
      %2055 = vmatpush1.bf16.msra.mxu0 %v2038
      %2056 = vmatprep.subr.bf16.mxu0 0
      %2057 = vmatpush2.bf16.msra.mxu0 0
      %2058 = vmatprep.subr.bf16.mxu0 0
      %2059 = vmatpush2.bf16.msra.mxu0 0
      %2060 = vmatprep.subr.bf16.mxu0 0
      %2061 = vmatpush2.bf16.msra.mxu0 0
      %2062 = vmatprep.subr.bf16.mxu0 0
      %2063 = vmatpush2.bf16.msra.mxu0 0
      %2064 = vmatprep.subr.bf16.mxu0 0
      %2065 = vmatpush2.bf16.msra.mxu0 0
      %2066 = vmatprep.subr.bf16.mxu0 0
      %2067 = vmatpush2.bf16.msra.mxu0 0
      %2068 = vmatprep.subr.bf16.mxu0 0
      %2069 = vmatpush2.bf16.msra.mxu0 0
      %2070 = vmatprep.subr.bf16.mxu0 0
      %2071 = vmatpush2.bf16.msra.mxu0 0
      %2072 = vmatprep.mubr.bf16.mxu0 0
      %2073 = vmatmul.mubr.bf16.gmra.mxu0 %v1996
      %v2074 = vpop.f32.mrf.mxu0
      %v2075 = vadd.f32 0.0, %v2074
      %v2076 = vpop.f32.mrf.mxu0
      %v2077 = vpop.f32.mrf.mxu0
      %v2078 = vadd.f32 0.0, %v2077
      %v2079 = vpop.f32.mrf.mxu0
      %2080 = vmatprep.mubr.bf16.mxu0 0
      %2081 = vmatmul.mubr.bf16.gmra.mxu0 %v1999
      %v2082 = vpop.f32.mrf.mxu0
      %v2083 = vadd.f32 0.0, %v2082
      %v2084 = vpop.f32.mrf.mxu0
      %v2085 = vpop.f32.mrf.mxu0
      %v2086 = vadd.f32 0.0, %v2085
      %v2087 = vpop.f32.mrf.mxu0
      %2088 = vmatprep.mubr.bf16.mxu0 0
      %2089 = vmatmul.mubr.bf16.gmra.mxu0 %v2002
      %v2090 = vpop.f32.mrf.mxu0
      %v2091 = vadd.f32 0.0, %v2090
      %v2092 = vpop.f32.mrf.mxu0
      %v2093 = vpop.f32.mrf.mxu0
      %v2094 = vadd.f32 0.0, %v2093
      %v2095 = vpop.f32.mrf.mxu0
      %2096 = vmatprep.mubr.bf16.mxu0 0
      %2097 = vmatmul.mubr.bf16.gmra.mxu0 %v2005
      %v2098 = vpop.f32.mrf.mxu0
      %v2099 = vadd.f32 0.0, %v2098
      %v2100 = vpop.f32.mrf.mxu0
      %v2101 = vpop.f32.mrf.mxu0
      %v2102 = vadd.f32 0.0, %v2101
      %v2103 = vpop.f32.mrf.mxu0
      %2104 = vmatprep.mubr.bf16.mxu0 0
      %2105 = vmatmul.mubr.bf16.gmra.mxu0 %v2008
      %v2106 = vpop.f32.mrf.mxu0
      %v2107 = vadd.f32 0.0, %v2106
      %v2108 = vpop.f32.mrf.mxu0
      %v2109 = vpop.f32.mrf.mxu0
      %v2110 = vadd.f32 0.0, %v2109
      %v2111 = vpop.f32.mrf.mxu0
      %2112 = vmatprep.mubr.bf16.mxu0 0
      %2113 = vmatmul.mubr.bf16.gmra.mxu0 %v2011
      %v2114 = vpop.f32.mrf.mxu0
      %v2115 = vadd.f32 0.0, %v2114
      %v2116 = vpop.f32.mrf.mxu0
      %v2117 = vpop.f32.mrf.mxu0
      %v2118 = vadd.f32 0.0, %v2117
      %v2119 = vpop.f32.mrf.mxu0
      %2120 = vmatprep.mubr.bf16.mxu0 0
      %2121 = vmatmul.mubr.bf16.gmra.mxu0 %v2014
      %v2122 = vpop.f32.mrf.mxu0
      %v2123 = vadd.f32 0.0, %v2122
      %v2124 = vpop.f32.mrf.mxu0
      %v2125 = vpop.f32.mrf.mxu0
      %v2126 = vadd.f32 0.0, %v2125
      %v2127 = vpop.f32.mrf.mxu0
      %2128 = vmatprep.mubr.bf16.mxu0 0
      %2129 = vmatmul.mubr.bf16.gmra.mxu0 %v2017
      %v2130 = vpop.f32.mrf.mxu0
      %v2131 = vadd.f32 0.0, %v2130
      %v2132 = vpop.f32.mrf.mxu0
      %v2133 = vpop.f32.mrf.mxu0
      %v2134 = vadd.f32 0.0, %v2133
      %v2135 = vpop.f32.mrf.mxu0
      %2136 = vmatprep.mubr.bf16.mxu0 0
      %2137 = vmatmul.mubr.bf16.gmra.mxu0 %v2020
      %v2138 = vpop.f32.mrf.mxu0
      %v2139 = vadd.f32 0.0, %v2138
      %v2140 = vpop.f32.mrf.mxu0
      %v2141 = vpop.f32.mrf.mxu0
      %v2142 = vadd.f32 0.0, %v2141
      %v2143 = vpop.f32.mrf.mxu0
      %2144 = vmatprep.mubr.bf16.mxu0 0
      %2145 = vmatmul.mubr.bf16.gmra.mxu0 %v2023
      %v2146 = vpop.f32.mrf.mxu0
      %v2147 = vadd.f32 0.0, %v2146
      %v2148 = vpop.f32.mrf.mxu0
      %v2149 = vpop.f32.mrf.mxu0
      %v2150 = vadd.f32 0.0, %v2149
      %v2151 = vpop.f32.mrf.mxu0
      %2152 = vmatprep.mubr.bf16.mxu0 0
      %2153 = vmatmul.mubr.bf16.gmra.mxu0 %v2026
      %v2154 = vpop.f32.mrf.mxu0
      %v2155 = vadd.f32 0.0, %v2154
      %v2156 = vpop.f32.mrf.mxu0
      %v2157 = vpop.f32.mrf.mxu0
      %v2158 = vadd.f32 0.0, %v2157
      %v2159 = vpop.f32.mrf.mxu0
      %2160 = vmatprep.mubr.bf16.mxu0 0
      %2161 = vmatmul.mubr.bf16.gmra.mxu0 %v2029
      %v2162 = vpop.f32.mrf.mxu0
      %v2163 = vadd.f32 0.0, %v2162
      %v2164 = vpop.f32.mrf.mxu0
      %v2165 = vpop.f32.mrf.mxu0
      %v2166 = vadd.f32 0.0, %v2165
      %v2167 = vpop.f32.mrf.mxu0
      %2168 = vmatprep.mubr.bf16.mxu0 0
      %2169 = vmatmul.mubr.bf16.gmra.mxu0 %v2032
      %v2170 = vpop.f32.mrf.mxu0
      %v2171 = vadd.f32 0.0, %v2170
      %v2172 = vpop.f32.mrf.mxu0
      %v2173 = vpop.f32.mrf.mxu0
      %v2174 = vadd.f32 0.0, %v2173
      %v2175 = vpop.f32.mrf.mxu0
      %2176 = vmatprep.mubr.bf16.mxu0 0
      %2177 = vmatmul.mubr.bf16.gmra.mxu0 %v2035
      %v2178 = vpop.f32.mrf.mxu0
      %v2179 = vadd.f32 0.0, %v2178
      %v2180 = vpop.f32.mrf.mxu0
      %v2181 = vpop.f32.mrf.mxu0
      %v2182 = vadd.f32 0.0, %v2181
      %v2183 = vpop.f32.mrf.mxu0
      %2184 = vdwg.mxu0
      %v2185 = vadd.f32 %v1923, %v2075
      %v2186 = vadd.f32 %v1924, %v2078
      %v2187 = vadd.f32 %v1925, %v2083
      %v2188 = vadd.f32 %v1926, %v2086
      %v2189 = vadd.f32 %v1927, %v2091
      %v2190 = vadd.f32 %v1928, %v2094
      %v2191 = vadd.f32 %v1929, %v2099
      %v2192 = vadd.f32 %v1930, %v2102
      %v2193 = vadd.f32 %v1931, %v2107
      %v2194 = vadd.f32 %v1932, %v2110
      %v2195 = vadd.f32 %v1933, %v2115
      %v2196 = vadd.f32 %v1934, %v2118
      %v2197 = vadd.f32 %v1935, %v2123
      %v2198 = vadd.f32 %v1936, %v2126
      %v2199 = vadd.f32 %v1937, %v2131
      %v2200 = vadd.f32 %v1938, %v2134
      %v2201 = vadd.f32 %v1939, %v2139
      %v2202 = vadd.f32 %v1940, %v2142
      %v2203 = vadd.f32 %v1941, %v2147
      %v2204 = vadd.f32 %v1942, %v2150
      %v2205 = vadd.f32 %v1943, %v2155
      %v2206 = vadd.f32 %v1944, %v2158
      %v2207 = vadd.f32 %v1945, %v2163
      %v2208 = vadd.f32 %v1946, %v2166
      %v2209 = vadd.f32 %v1947, %v2171
      %v2210 = vadd.f32 %v1948, %v2174
      %v2211 = vadd.f32 %v1949, %v2179
      %v2212 = vadd.f32 %v1950, %v2182
      %v2213 = vld [vmem:[%s165 + $0x22] sm:$0xff]
      %v2214 = vld [vmem:[%s165 + $0x2a] sm:$0xff]
      %v2215 = vld [vmem:[%s165 + $0x32] sm:$0xff]
      %v2216 = vld [vmem:[%s165 + $0x3a] sm:$0xff]
      %v2217 = vld [vmem:[%s165 + $0x42] sm:$0xff]
      %v2218 = vld [vmem:[%s165 + $0x4a] sm:$0xff]
      %v2219 = vld [vmem:[%s165 + $0x52] sm:$0xff]
      %v2220 = vld [vmem:[%s165 + $0x5a] sm:$0xff]
      %v2221 = vld [vmem:[%s165 + $0x62] sm:$0xff]
      %v2222 = vld [vmem:[%s165 + $0x6a] sm:$0xff]
      %v2223 = vld [vmem:[%s165 + $0x72] sm:$0xff]
      %v2224 = vld [vmem:[%s165 + $0x7a] sm:$0xff]
      %v2225 = vld [vmem:[%s165 + $0x82] sm:$0xff]
      %v2226 = vld [vmem:[%s165 + $0x8a] sm:$0xff]
      %v2227 = vld [vmem:[%s165 + $0x92] sm:$0xff]
      %v2228 = vld [vmem:[%s165 + $0x9a] sm:$0xff]
      %v2229 = vld [vmem:[%s165 + $0xa2] sm:$0xff]
      %v2230 = vld [vmem:[%s165 + $0xaa] sm:$0xff]
      %v2231 = vld [vmem:[%s165 + $0xb2] sm:$0xff]
      %v2232 = vld [vmem:[%s165 + $0xba] sm:$0xff]
      %v2233 = vld [vmem:[%s165 + $0xc2] sm:$0xff]
      %v2234 = vld [vmem:[%s165 + $0xca] sm:$0xff]
      %v2235 = vld [vmem:[%s165 + $0xd2] sm:$0xff]
      %v2236 = vld [vmem:[%s165 + $0xda] sm:$0xff]
      %v2237 = vld [vmem:[%s165 + $0xe2] sm:$0xff]
      %v2238 = vld [vmem:[%s165 + $0xea] sm:$0xff]
      %v2239 = vld [vmem:[%s165 + $0xf2] sm:$0xff]
      %v2240 = vld [vmem:[%s165 + $0xfa] sm:$0xff]
      %v2241 = vpack.c.bf16 %v2214, %v2213
      %v2242 = vpack.c.bf16 %v2216, %v2215
      %v2243 = vpack.c.bf16 %v2218, %v2217
      %v2244 = vpack.c.bf16 %v2220, %v2219
      %v2245 = vpack.c.bf16 %v2222, %v2221
      %v2246 = vpack.c.bf16 %v2224, %v2223
      %v2247 = vpack.c.bf16 %v2226, %v2225
      %v2248 = vpack.c.bf16 %v2228, %v2227
      %v2249 = vpack.c.bf16 %v2230, %v2229
      %v2250 = vpack.c.bf16 %v2232, %v2231
      %v2251 = vpack.c.bf16 %v2234, %v2233
      %v2252 = vpack.c.bf16 %v2236, %v2235
      %v2253 = vpack.c.bf16 %v2238, %v2237
      %v2254 = vpack.c.bf16 %v2240, %v2239
      %s2255 = scalar_lea.vmem %s1, 16
      %v2256 = vld [vmem:[%s2255] sm:$0x3]
      %v2258 = vsel %vm259, %v2241, 0
      %v2261 = vsel %vm259, %v2242, 0
      %v2264 = vsel %vm259, %v2243, 0
      %v2267 = vsel %vm259, %v2244, 0
      %v2270 = vsel %vm259, %v2245, 0
      %v2273 = vsel %vm259, %v2246, 0
      %v2276 = vsel %vm259, %v2247, 0
      %v2279 = vsel %vm259, %v2248, 0
      %v2282 = vsel %vm259, %v2249, 0
      %v2285 = vsel %vm259, %v2250, 0
      %v2288 = vsel %vm259, %v2251, 0
      %v2291 = vsel %vm259, %v2252, 0
      %v2294 = vsel %vm259, %v2253, 0
      %v2297 = vsel %vm259, %v2254, 0
      %v2300 = vsel %vm302, %v2256, 0
      %2302 = vmatprep.subr.bf16.mxu0 0
      %2303 = vmatpush1.bf16.msra.mxu0 0
      %2304 = vmatprep.subr.bf16.mxu0 0
      %2305 = vmatpush1.bf16.msra.mxu0 0
      %2306 = vmatprep.subr.bf16.mxu0 0
      %2307 = vmatpush1.bf16.msra.mxu0 0
      %2308 = vmatprep.subr.bf16.mxu0 0
      %2309 = vmatpush1.bf16.msra.mxu0 0
      %2310 = vmatprep.subr.bf16.mxu0 0
      %2311 = vmatpush1.bf16.msra.mxu0 0
      %2312 = vmatprep.subr.bf16.mxu0 0
      %2313 = vmatpush1.bf16.msra.mxu0 0
      %2314 = vmatprep.subr.bf16.mxu0 0
      %2315 = vmatpush1.bf16.msra.mxu0 0
      %2316 = vmatprep.subr.bf16.mxu0 0
      %2317 = vmatpush1.bf16.msra.mxu0 %v2300
      %2318 = vmatprep.subr.bf16.mxu0 0
      %2319 = vmatpush2.bf16.msra.mxu0 0
      %2320 = vmatprep.subr.bf16.mxu0 0
      %2321 = vmatpush2.bf16.msra.mxu0 0
      %2322 = vmatprep.subr.bf16.mxu0 0
      %2323 = vmatpush2.bf16.msra.mxu0 0
      %2324 = vmatprep.subr.bf16.mxu0 0
      %2325 = vmatpush2.bf16.msra.mxu0 0
      %2326 = vmatprep.subr.bf16.mxu0 0
      %2327 = vmatpush2.bf16.msra.mxu0 0
      %2328 = vmatprep.subr.bf16.mxu0 0
      %2329 = vmatpush2.bf16.msra.mxu0 0
      %2330 = vmatprep.subr.bf16.mxu0 0
      %2331 = vmatpush2.bf16.msra.mxu0 0
      %2332 = vmatprep.subr.bf16.mxu0 0
      %2333 = vmatpush2.bf16.msra.mxu0 0
      %2334 = vmatprep.mubr.bf16.mxu0 0
      %2335 = vmatmul.mubr.bf16.gmra.mxu0 %v2258
      %v2336 = vpop.f32.mrf.mxu0
      %v2337 = vadd.f32 0.0, %v2336
      %v2338 = vpop.f32.mrf.mxu0
      %v2339 = vpop.f32.mrf.mxu0
      %v2340 = vadd.f32 0.0, %v2339
      %v2341 = vpop.f32.mrf.mxu0
      %2342 = vmatprep.mubr.bf16.mxu0 0
      %2343 = vmatmul.mubr.bf16.gmra.mxu0 %v2261
      %v2344 = vpop.f32.mrf.mxu0
      %v2345 = vadd.f32 0.0, %v2344
      %v2346 = vpop.f32.mrf.mxu0
      %v2347 = vpop.f32.mrf.mxu0
      %v2348 = vadd.f32 0.0, %v2347
      %v2349 = vpop.f32.mrf.mxu0
      %2350 = vmatprep.mubr.bf16.mxu0 0
      %2351 = vmatmul.mubr.bf16.gmra.mxu0 %v2264
      %v2352 = vpop.f32.mrf.mxu0
      %v2353 = vadd.f32 0.0, %v2352
      %v2354 = vpop.f32.mrf.mxu0
      %v2355 = vpop.f32.mrf.mxu0
      %v2356 = vadd.f32 0.0, %v2355
      %v2357 = vpop.f32.mrf.mxu0
      %2358 = vmatprep.mubr.bf16.mxu0 0
      %2359 = vmatmul.mubr.bf16.gmra.mxu0 %v2267
      %v2360 = vpop.f32.mrf.mxu0
      %v2361 = vadd.f32 0.0, %v2360
      %v2362 = vpop.f32.mrf.mxu0
      %v2363 = vpop.f32.mrf.mxu0
      %v2364 = vadd.f32 0.0, %v2363
      %v2365 = vpop.f32.mrf.mxu0
      %2366 = vmatprep.mubr.bf16.mxu0 0
      %2367 = vmatmul.mubr.bf16.gmra.mxu0 %v2270
      %v2368 = vpop.f32.mrf.mxu0
      %v2369 = vadd.f32 0.0, %v2368
      %v2370 = vpop.f32.mrf.mxu0
      %v2371 = vpop.f32.mrf.mxu0
      %v2372 = vadd.f32 0.0, %v2371
      %v2373 = vpop.f32.mrf.mxu0
      %2374 = vmatprep.mubr.bf16.mxu0 0
      %2375 = vmatmul.mubr.bf16.gmra.mxu0 %v2273
      %v2376 = vpop.f32.mrf.mxu0
      %v2377 = vadd.f32 0.0, %v2376
      %v2378 = vpop.f32.mrf.mxu0
      %v2379 = vpop.f32.mrf.mxu0
      %v2380 = vadd.f32 0.0, %v2379
      %v2381 = vpop.f32.mrf.mxu0
      %2382 = vmatprep.mubr.bf16.mxu0 0
      %2383 = vmatmul.mubr.bf16.gmra.mxu0 %v2276
      %v2384 = vpop.f32.mrf.mxu0
      %v2385 = vadd.f32 0.0, %v2384
      %v2386 = vpop.f32.mrf.mxu0
      %v2387 = vpop.f32.mrf.mxu0
      %v2388 = vadd.f32 0.0, %v2387
      %v2389 = vpop.f32.mrf.mxu0
      %2390 = vmatprep.mubr.bf16.mxu0 0
      %2391 = vmatmul.mubr.bf16.gmra.mxu0 %v2279
      %v2392 = vpop.f32.mrf.mxu0
      %v2393 = vadd.f32 0.0, %v2392
      %v2394 = vpop.f32.mrf.mxu0
      %v2395 = vpop.f32.mrf.mxu0
      %v2396 = vadd.f32 0.0, %v2395
      %v2397 = vpop.f32.mrf.mxu0
      %2398 = vmatprep.mubr.bf16.mxu0 0
      %2399 = vmatmul.mubr.bf16.gmra.mxu0 %v2282
      %v2400 = vpop.f32.mrf.mxu0
      %v2401 = vadd.f32 0.0, %v2400
      %v2402 = vpop.f32.mrf.mxu0
      %v2403 = vpop.f32.mrf.mxu0
      %v2404 = vadd.f32 0.0, %v2403
      %v2405 = vpop.f32.mrf.mxu0
      %2406 = vmatprep.mubr.bf16.mxu0 0
      %2407 = vmatmul.mubr.bf16.gmra.mxu0 %v2285
      %v2408 = vpop.f32.mrf.mxu0
      %v2409 = vadd.f32 0.0, %v2408
      %v2410 = vpop.f32.mrf.mxu0
      %v2411 = vpop.f32.mrf.mxu0
      %v2412 = vadd.f32 0.0, %v2411
      %v2413 = vpop.f32.mrf.mxu0
      %2414 = vmatprep.mubr.bf16.mxu0 0
      %2415 = vmatmul.mubr.bf16.gmra.mxu0 %v2288
      %v2416 = vpop.f32.mrf.mxu0
      %v2417 = vadd.f32 0.0, %v2416
      %v2418 = vpop.f32.mrf.mxu0
      %v2419 = vpop.f32.mrf.mxu0
      %v2420 = vadd.f32 0.0, %v2419
      %v2421 = vpop.f32.mrf.mxu0
      %2422 = vmatprep.mubr.bf16.mxu0 0
      %2423 = vmatmul.mubr.bf16.gmra.mxu0 %v2291
      %v2424 = vpop.f32.mrf.mxu0
      %v2425 = vadd.f32 0.0, %v2424
      %v2426 = vpop.f32.mrf.mxu0
      %v2427 = vpop.f32.mrf.mxu0
      %v2428 = vadd.f32 0.0, %v2427
      %v2429 = vpop.f32.mrf.mxu0
      %2430 = vmatprep.mubr.bf16.mxu0 0
      %2431 = vmatmul.mubr.bf16.gmra.mxu0 %v2294
      %v2432 = vpop.f32.mrf.mxu0
      %v2433 = vadd.f32 0.0, %v2432
      %v2434 = vpop.f32.mrf.mxu0
      %v2435 = vpop.f32.mrf.mxu0
      %v2436 = vadd.f32 0.0, %v2435
      %v2437 = vpop.f32.mrf.mxu0
      %2438 = vmatprep.mubr.bf16.mxu0 0
      %2439 = vmatmul.mubr.bf16.gmra.mxu0 %v2297
      %v2440 = vpop.f32.mrf.mxu0
      %v2441 = vadd.f32 0.0, %v2440
      %v2442 = vpop.f32.mrf.mxu0
      %v2443 = vpop.f32.mrf.mxu0
      %v2444 = vadd.f32 0.0, %v2443
      %v2445 = vpop.f32.mrf.mxu0
      %2446 = vdwg.mxu0
      %v2447 = vadd.f32 %v2185, %v2337
      %v2448 = vadd.f32 %v2186, %v2340
      %v2449 = vadd.f32 %v2187, %v2345
      %v2450 = vadd.f32 %v2188, %v2348
      %v2451 = vadd.f32 %v2189, %v2353
      %v2452 = vadd.f32 %v2190, %v2356
      %v2453 = vadd.f32 %v2191, %v2361
      %v2454 = vadd.f32 %v2192, %v2364
      %v2455 = vadd.f32 %v2193, %v2369
      %v2456 = vadd.f32 %v2194, %v2372
      %v2457 = vadd.f32 %v2195, %v2377
      %v2458 = vadd.f32 %v2196, %v2380
      %v2459 = vadd.f32 %v2197, %v2385
      %v2460 = vadd.f32 %v2198, %v2388
      %v2461 = vadd.f32 %v2199, %v2393
      %v2462 = vadd.f32 %v2200, %v2396
      %v2463 = vadd.f32 %v2201, %v2401
      %v2464 = vadd.f32 %v2202, %v2404
      %v2465 = vadd.f32 %v2203, %v2409
      %v2466 = vadd.f32 %v2204, %v2412
      %v2467 = vadd.f32 %v2205, %v2417
      %v2468 = vadd.f32 %v2206, %v2420
      %v2469 = vadd.f32 %v2207, %v2425
      %v2470 = vadd.f32 %v2208, %v2428
      %v2471 = vadd.f32 %v2209, %v2433
      %v2472 = vadd.f32 %v2210, %v2436
      %v2473 = vadd.f32 %v2211, %v2441
      %v2474 = vadd.f32 %v2212, %v2444
      %v2475 = vld [vmem:[%s2] sm:$0x1]
      %v2477 = vlaneseq
      %v2478 = vshrl.u32 %v2477, 7
      %v2479 = vsub.s32 0, %v2478
      %v2480 = vrot.slane %v2475, %v2479
      %v2482 = vadd.f32 %v2447, %v2480
      %v2483 = vadd.f32 %v2448, %v2480
      %v2484 = vadd.f32 %v2449, %v2480
      %v2485 = vadd.f32 %v2450, %v2480
      %v2486 = vadd.f32 %v2451, %v2480
      %v2487 = vadd.f32 %v2452, %v2480
      %v2488 = vadd.f32 %v2453, %v2480
      %v2489 = vadd.f32 %v2454, %v2480
      %v2490 = vadd.f32 %v2455, %v2480
      %v2491 = vadd.f32 %v2456, %v2480
      %v2492 = vadd.f32 %v2457, %v2480
      %v2493 = vadd.f32 %v2458, %v2480
      %v2494 = vadd.f32 %v2459, %v2480
      %v2495 = vadd.f32 %v2460, %v2480
      %v2496 = vadd.f32 %v2461, %v2480
      %v2497 = vadd.f32 %v2462, %v2480
      %v2498 = vadd.f32 %v2463, %v2480
      %v2499 = vadd.f32 %v2464, %v2480
      %v2500 = vadd.f32 %v2465, %v2480
      %v2501 = vadd.f32 %v2466, %v2480
      %v2502 = vadd.f32 %v2467, %v2480
      %v2503 = vadd.f32 %v2468, %v2480
      %v2504 = vadd.f32 %v2469, %v2480
      %v2505 = vadd.f32 %v2470, %v2480
      %v2506 = vadd.f32 %v2471, %v2480
      %v2507 = vadd.f32 %v2472, %v2480
      %v2508 = vadd.f32 %v2473, %v2480
      %v2509 = vadd.f32 %v2474, %v2480
      %v2510 = vmax.f32 %v2482, 0.0
      %v2511 = vmax.f32 %v2483, 0.0
      %v2512 = vmax.f32 %v2484, 0.0
      %v2513 = vmax.f32 %v2485, 0.0
      %v2514 = vmax.f32 %v2486, 0.0
      %v2515 = vmax.f32 %v2487, 0.0
      %v2516 = vmax.f32 %v2488, 0.0
      %v2517 = vmax.f32 %v2489, 0.0
      %v2518 = vmax.f32 %v2490, 0.0
      %v2519 = vmax.f32 %v2491, 0.0
      %v2520 = vmax.f32 %v2492, 0.0
      %v2521 = vmax.f32 %v2493, 0.0
      %v2522 = vmax.f32 %v2494, 0.0
      %v2523 = vmax.f32 %v2495, 0.0
      %v2524 = vmax.f32 %v2496, 0.0
      %v2525 = vmax.f32 %v2497, 0.0
      %v2526 = vmax.f32 %v2498, 0.0
      %v2527 = vmax.f32 %v2499, 0.0
      %v2528 = vmax.f32 %v2500, 0.0
      %v2529 = vmax.f32 %v2501, 0.0
      %v2530 = vmax.f32 %v2502, 0.0
      %v2531 = vmax.f32 %v2503, 0.0
      %v2532 = vmax.f32 %v2504, 0.0
      %v2533 = vmax.f32 %v2505, 0.0
      %v2534 = vmax.f32 %v2506, 0.0
      %v2535 = vmax.f32 %v2507, 0.0
      %v2536 = vmax.f32 %v2508, 0.0
      %v2537 = vmax.f32 %v2509, 0.0
      %v2538 = vpack.c.bf16 %v2511, %v2510
      %v2539 = vpack.c.bf16 %v2513, %v2512
      %v2540 = vpack.c.bf16 %v2515, %v2514
      %v2541 = vpack.c.bf16 %v2517, %v2516
      %v2542 = vpack.c.bf16 %v2519, %v2518
      %v2543 = vpack.c.bf16 %v2521, %v2520
      %v2544 = vpack.c.bf16 %v2523, %v2522
      %v2545 = vpack.c.bf16 %v2525, %v2524
      %v2546 = vpack.c.bf16 %v2527, %v2526
      %v2547 = vpack.c.bf16 %v2529, %v2528
      %v2548 = vpack.c.bf16 %v2531, %v2530
      %v2549 = vpack.c.bf16 %v2533, %v2532
      %v2550 = vpack.c.bf16 %v2535, %v2534
      %v2551 = vpack.c.bf16 %v2537, %v2536
      %v2566 = vunpack.c.l.b16 %v2538
      %v2567 = vunpack.c.h.b16 %v2538
      %v2568 = vunpack.c.l.b16 %v2539
      %v2569 = vunpack.c.h.b16 %v2539
      %v2570 = vunpack.c.l.b16 %v2540
      %v2571 = vunpack.c.h.b16 %v2540
      %v2572 = vunpack.c.l.b16 %v2541
      %v2573 = vunpack.c.h.b16 %v2541
      %v2574 = vunpack.c.l.b16 %v2542
      %v2575 = vunpack.c.h.b16 %v2542
      %v2576 = vunpack.c.l.b16 %v2543
      %v2577 = vunpack.c.h.b16 %v2543
      %v2578 = vunpack.c.l.b16 %v2544
      %v2579 = vunpack.c.h.b16 %v2544
      %v2580 = vunpack.c.l.b16 %v2545
      %v2581 = vunpack.c.h.b16 %v2545
      %v2582 = vunpack.c.l.b16 %v2546
      %v2583 = vunpack.c.h.b16 %v2546
      %v2584 = vunpack.c.l.b16 %v2547
      %v2585 = vunpack.c.h.b16 %v2547
      %v2586 = vunpack.c.l.b16 %v2548
      %v2587 = vunpack.c.h.b16 %v2548
      %v2588 = vunpack.c.l.b16 %v2549
      %v2589 = vunpack.c.h.b16 %v2549
      %v2590 = vunpack.c.l.b16 %v2550
      %v2591 = vunpack.c.h.b16 %v2550
      %v2592 = vunpack.c.l.b16 %v2551
      %v2593 = vunpack.c.h.b16 %v2551
      %v2594 = vpack.c.b16 %v2566, %v2566
      %v2595 = vpack.c.b16 %v2567, %v2567
      %v2596 = vpack.c.b16 %v2568, %v2568
      %v2597 = vpack.c.b16 %v2569, %v2569
      %v2598 = vpack.c.b16 %v2570, %v2570
      %v2599 = vpack.c.b16 %v2571, %v2571
      %v2600 = vpack.c.b16 %v2572, %v2572
      %v2601 = vpack.c.b16 %v2573, %v2573
      %v2602 = vpack.c.b16 %v2574, %v2574
      %v2603 = vpack.c.b16 %v2575, %v2575
      %v2604 = vpack.c.b16 %v2576, %v2576
      %v2605 = vpack.c.b16 %v2577, %v2577
      %v2606 = vpack.c.b16 %v2578, %v2578
      %v2607 = vpack.c.b16 %v2579, %v2579
      %v2608 = vpack.c.b16 %v2580, %v2580
      %v2609 = vpack.c.b16 %v2581, %v2581
      %v2610 = vpack.c.b16 %v2582, %v2582
      %v2611 = vpack.c.b16 %v2583, %v2583
      %v2612 = vpack.c.b16 %v2584, %v2584
      %v2613 = vpack.c.b16 %v2585, %v2585
      %v2614 = vpack.c.b16 %v2586, %v2586
      %v2615 = vpack.c.b16 %v2587, %v2587
      %v2616 = vpack.c.b16 %v2588, %v2588
      %v2617 = vpack.c.b16 %v2589, %v2589
      %v2618 = vpack.c.b16 %v2590, %v2590
      %v2619 = vpack.c.b16 %v2591, %v2591
      %v2620 = vpack.c.b16 %v2592, %v2592
      %v2621 = vpack.c.b16 %v2593, %v2593
      %vm2650 = vcmask 60416
      %2651 = vst.msk [vmem:[%s170] sm:$0xf] %vm2650, %v2594
      %2652 = vst.msk [vmem:[%s170 + $0x4] sm:$0xf] %vm2650, %v2595
      %2653 = vst.msk [vmem:[%s170 + $0x8] sm:$0xf] %vm2650, %v2596
      %2654 = vst.msk [vmem:[%s170 + $0xc] sm:$0xf] %vm2650, %v2597
      %2655 = vst.msk [vmem:[%s170 + $0x10] sm:$0xf] %vm2650, %v2598
      %2656 = vst.msk [vmem:[%s170 + $0x14] sm:$0xf] %vm2650, %v2599
      %2657 = vst.msk [vmem:[%s170 + $0x18] sm:$0xf] %vm2650, %v2600
      %2658 = vst.msk [vmem:[%s170 + $0x1c] sm:$0xf] %vm2650, %v2601
      %2659 = vst.msk [vmem:[%s170 + $0x20] sm:$0xf] %vm2650, %v2602
      %2660 = vst.msk [vmem:[%s170 + $0x24] sm:$0xf] %vm2650, %v2603
      %2661 = vst.msk [vmem:[%s170 + $0x28] sm:$0xf] %vm2650, %v2604
      %2662 = vst.msk [vmem:[%s170 + $0x2c] sm:$0xf] %vm2650, %v2605
      %2663 = vst.msk [vmem:[%s170 + $0x30] sm:$0xf] %vm2650, %v2606
      %2664 = vst.msk [vmem:[%s170 + $0x34] sm:$0xf] %vm2650, %v2607
      %2665 = vst.msk [vmem:[%s170 + $0x38] sm:$0xf] %vm2650, %v2608
      %2666 = vst.msk [vmem:[%s170 + $0x3c] sm:$0xf] %vm2650, %v2609
      %2667 = vst.msk [vmem:[%s170 + $0x40] sm:$0xf] %vm2650, %v2610
      %2668 = vst.msk [vmem:[%s170 + $0x44] sm:$0xf] %vm2650, %v2611
      %2669 = vst.msk [vmem:[%s170 + $0x48] sm:$0xf] %vm2650, %v2612
      %2670 = vst.msk [vmem:[%s170 + $0x4c] sm:$0xf] %vm2650, %v2613
      %2671 = vst.msk [vmem:[%s170 + $0x50] sm:$0xf] %vm2650, %v2614
      %2672 = vst.msk [vmem:[%s170 + $0x54] sm:$0xf] %vm2650, %v2615
      %2673 = vst.msk [vmem:[%s170 + $0x58] sm:$0xf] %vm2650, %v2616
      %2674 = vst.msk [vmem:[%s170 + $0x5c] sm:$0xf] %vm2650, %v2617
      %2675 = vst.msk [vmem:[%s170 + $0x60] sm:$0xf] %vm2650, %v2618
      %2676 = vst.msk [vmem:[%s170 + $0x64] sm:$0xf] %vm2650, %v2619
      %2677 = vst.msk [vmem:[%s170 + $0x68] sm:$0xf] %vm2650, %v2620
      %2678 = vst.msk [vmem:[%s170 + $0x6c] sm:$0xf] %vm2650, %v2621
      %p2679 = scmp.lt.s32.totalorder %s14, 1
      %s2680 = scalar_select %p2679, %s14, 1
      %s2681 = smul.addr %s2680, 28
      %s2682 = smul.addr %s2681, 4
      %s2683 = scalar_lea.vmem %s3, %s2682
      // Predicated region
      $region33: #{conv_layer_pallas.1} parent=31 // pred_check
        %p2684 = pneg %p100
      $region34: #{conv_layer_pallas.1} parent=31 // pred_check_branch
        %2686 = sbr.rel (%p2684) target = $region36
      $region35: #{conv_layer_pallas.1} parent=31 // pred_region
        _
      $region36: #{conv_layer_pallas.1} parent=31 // pred_fallthru
        _
    $region32: #{conv_layer_pallas.1} parent=5 // pred_fallthru
      _
    %p2687 = scmp.le.s32.totalorder 2, %s9
    // Predicated region
    $region37: #{conv_layer_pallas.1} parent=5 // pred_check
      %p2688 = pneg %p2687
    $region38: #{conv_layer_pallas.1} parent=5 // pred_check_branch
      %2690 = sbr.rel (%p2688) target = $region40
    $region39: #{conv_layer_pallas.1} parent=5 // pred_region
      %s2691 = ssub.s32 %s9, 2
      // Predicated region
      $region41: #{conv_layer_pallas.1} parent=39 // pred_check
        %p2692 = pneg %p106
      $region42: #{conv_layer_pallas.1} parent=39 // pred_check_branch
        %2694 = sbr.rel (%p2692) target = $region44
      $region43: #{conv_layer_pallas.1} parent=39 // pred_region
        %p2695 = scmp.lt.s32.totalorder %s15, 1
        %s2696 = scalar_select %p2695, %s15, 1
        %s2697 = smul.addr %s2696, 28
        %s2698 = smul.addr %s2697, 4
        %s2699 = scalar_lea.vmem %s3, %s2698
      $region44: #{conv_layer_pallas.1} parent=39 // pred_fallthru
        _
    $region40: #{conv_layer_pallas.1} parent=5 // pred_fallthru
      _
  $region6: #{conv_layer_pallas.1} parent=0 // loop_footer
    %s13 = sadd.s32 1, %s9
  $region7: #{conv_layer_pallas.1} parent=0 // loop_footer_branch
    %8 = sbr.rel target = $region3
  $region8: #{conv_layer_pallas.1} parent=0 // loop_exit
    _

</llo_original>
